<compile_context>
chip_gen: v7x
topology: tpu7x:2x2x1
jax: 0.10.0
libtpu: 0.0.40
codegen_flags: <defaults>
</compile_context>

<pallas_src>
import functools
import math

import jax
import jax.numpy as jnp
from jax.experimental import pallas as pl
from jax.experimental.pallas import tpu as pltpu


def _siamese_dist_kernel(x1_ref, x2_ref, w_ref, o_ref, *, output_bias):
    # x1/x2 arrive as bf16 (half the HBM bytes).  Upcast and subtract in f32 on
    # the VPU (works on v5e, keeps small-distance cancellation exact), then
    # pack the difference to bf16 for the MXU with an f32 accumulator.
    diff = x1_ref[...].astype(jnp.float32) - x2_ref[...].astype(jnp.float32)  # [tm, F]
    diff_e = jnp.dot(
        diff.astype(jnp.bfloat16),                         # bf16 LHS
        w_ref[...],                                        # bf16 RHS (resident)
        preferred_element_type=jnp.float32,                # f32 accumulate
    )                                                      # [tm, D] f32
    # Per-row Euclidean distance (elementwise_dist with p=2) + output bias.
    sq = jnp.sum(diff_e * diff_e, axis=-1, keepdims=True)  # [tm, 1]
    dist = jnp.sqrt(sq) + jnp.float32(output_bias)         # [tm, 1]
    # One relayout per tile into the lane-dense (1, tm) output block
    # (tm is a multiple of 128 -> unmasked stores).
    o_ref[...] = jnp.transpose(dist)                       # [1, tm]


@functools.partial(jax.jit, static_argnames=("output_bias",))
def trivial_distance_siamese(x1, x2, w, b=None, output_bias=0.0):
    """TrivialDistanceSiamese.forward with a synthetic linear extractor.

    x1, x2: [N, C, H, W].  w: [F, D] extractor weight (F = C*H*W).
    Returns per-row Euclidean distance between extractor(x1) and extractor(x2)
    plus output_bias, shape [N] f32.

    `b` (extractor bias) is accepted for API parity with the linear extractor
    but is unused: it cancels exactly inside e1 - e2 = (x1 - x2) @ W.
    # TODO(synk): if the real extractor is nonlinear (e.g. ViT), the
    # single-matmul-on-the-difference identity no longer holds.
    """
    del b  # cancels in the distance; no work needed.
    n = x1.shape[0]
    f = math.prod(x1.shape[1:])
    d = w.shape[-1]

    # Row tile: multiple of 256 when N allows (matches the v6e/v7x 256-wide
    # MXU), otherwise a single 128-row tile.  N is padded up to a tile
    # multiple so output stores are unmasked and the grid is exact.
    tm = 256 if n > 128 else 128
    n_pad = tm * pl.cdiv(n, tm)

    # Ship the x streams as bf16 (halves their HBM bytes).  Under jit these
    # casts / reshapes / pads fuse with the surrounding program instead of
    # dispatching as standalone eager ops per call.
    x1f = x1.reshape(n, f).astype(jnp.bfloat16)
    x2f = x2.reshape(n, f).astype(jnp.bfloat16)
    if n_pad != n:
        pad = ((0, n_pad - n), (0, 0))
        x1f = jnp.pad(x1f, pad)
        x2f = jnp.pad(x2f, pad)
    w_bf = w.astype(jnp.bfloat16)

    kernel = functools.partial(_siamese_dist_kernel, output_bias=float(output_bias))

    out = pl.pallas_call(
        kernel,
        out_shape=jax.ShapeDtypeStruct((1, n_pad), jnp.float32),
        grid=(n_pad // tm,),
        in_specs=[
            pl.BlockSpec((tm, f), lambda i: (i, 0)),
            pl.BlockSpec((tm, f), lambda i: (i, 0)),
            # Constant index map: weight is DMA'd once and stays VMEM-resident
            # across all N tiles.
            pl.BlockSpec((f, d), lambda i: (0, 0)),
        ],
        out_specs=pl.BlockSpec((1, tm), lambda i: (0, i)),
        compiler_params=pltpu.CompilerParams(
            # Row tiles are independent: megacore-shard on v7x (2 TCs),
            # harmless on v5e/v6e.
            dimension_semantics=("parallel",),
            # Per-tile working set is only a few MiB; 32 MiB is safely under
            # v7x's 64 MiB physical VMEM and v5e/v6e defaults.
            vmem_limit_bytes=32 << 20,
        ),
    )(x1f, x2f, w_bf)

    return out[0, :n]


if __name__ == "__main__":
    key = jax.random.PRNGKey(0)
    k1, k2, kw, kb = jax.random.split(key, 4)

    N, C, H, W = 2, 4, 16, 16
    D = 32
    F = C * H * W

    x1 = jax.random.normal(k1, (N, C, H, W), dtype=jnp.float32)
    x2 = jax.random.normal(k2, (N, C, H, W), dtype=jnp.float32)

    # Deterministic synthetic linear extractor (F -> D).
    w = jax.random.normal(kw, (F, D), dtype=jnp.float32) * 0.02
    b = jax.random.normal(kb, (D,), dtype=jnp.float32) * 0.01

    output_bias = 0.5

    out = trivial_distance_siamese(x1, x2, w, b, output_bias=output_bias)
    out = jax.block_until_ready(out)

    # Pure-JAX f32 reference: full module math (extractor bias included — it
    # cancels, which the kernel exploits).
    e1 = x1.reshape(N, F) @ w + b
    e2 = x2.reshape(N, F) @ w + b
    ref = jnp.sqrt(jnp.sum((e1 - e2) ** 2, axis=-1)) + output_bias

    assert out.shape == (N,)
    # Tolerance relaxed because x streams and matmul operands are bf16
    # (subtraction and accumulation are f32).
    assert jnp.allclose(out, ref, atol=2e-2, rtol=2e-2), (out, ref)

    print("KERNEL_OK")
</pallas_src>

<mosaic_0001>
module attributes {stable_mosaic.version = 11 : i64} {
  func.func @_siamese_dist_kernel(%arg0: i32, %arg1: memref<128x1024xbf16, #tpu.memory_space<vmem>>, %arg2: memref<128x1024xbf16, #tpu.memory_space<vmem>>, %arg3: memref<1024x32xbf16, #tpu.memory_space<vmem>>, %arg4: memref<1x128xf32, #tpu.memory_space<vmem>>) attributes {dimension_semantics = [#tpu.dimension_semantics<parallel>], iteration_bounds = array<i64: 1>, scalar_prefetch = 0 : i64, scratch_operands = 0 : i64, tpu.core_type = #tpu.core_type<tc>, window_params = [{transform_indices = @transform_0, window_bounds = array<i64: 128, 1024>}, {transform_indices = @transform_1, window_bounds = array<i64: 128, 1024>}, {pipeline_mode = #tpu.pipeline_mode<synchronous>, transform_indices = @transform_2, window_bounds = array<i64: 1024, 32>}, {transform_indices = @transform_3, window_bounds = array<i64: 1, 128>}]} {
    %c0 = arith.constant 0 : index
    %c0_0 = arith.constant 0 : index
    %0 = vector.load %arg1[%c0, %c0_0] : memref<128x1024xbf16, #tpu.memory_space<vmem>>, vector<128x1024xbf16>
    %1 = arith.extf %0 : vector<128x1024xbf16> to vector<128x1024xf32>
    %c0_1 = arith.constant 0 : index
    %c0_2 = arith.constant 0 : index
    %2 = vector.load %arg2[%c0_1, %c0_2] : memref<128x1024xbf16, #tpu.memory_space<vmem>>, vector<128x1024xbf16>
    %3 = arith.extf %2 : vector<128x1024xbf16> to vector<128x1024xf32>
    %4 = arith.subf %1, %3 : vector<128x1024xf32>
    %5 = arith.truncf %4 : vector<128x1024xf32> to vector<128x1024xbf16>
    %c0_3 = arith.constant 0 : index
    %c0_4 = arith.constant 0 : index
    %6 = vector.load %arg3[%c0_3, %c0_4] : memref<1024x32xbf16, #tpu.memory_space<vmem>>, vector<1024x32xbf16>
    %cst = arith.constant dense<0.000000e+00> : vector<128x32xf32>
    %7 = tpu.matmul %5, %6, %cst {dimension_numbers = #tpu.dot_dimension_numbers<[1], [0], [0], [1], [0, 0, 1, 1], [], []>} : vector<128x1024xbf16>, vector<1024x32xbf16>, vector<128x32xf32> -> vector<128x32xf32>
    %8 = arith.mulf %7, %7 : vector<128x32xf32>
    %cst_5 = arith.constant dense<0.000000e+00> : vector<128xf32>
    %9 = vector.multi_reduction <add>, %8, %cst_5 [1] : vector<128x32xf32> to vector<128xf32>
    %10 = vector.shape_cast %9 : vector<128xf32> to vector<128x1xf32>
    %11 = math.sqrt %10 : vector<128x1xf32>
    %cst_6 = arith.constant 5.000000e-01 : f32
    %12 = vector.broadcast %cst_6 : f32 to vector<128x1xf32>
    %13 = arith.addf %11, %12 : vector<128x1xf32>
    %14 = tpu.transpose %13, [1, 0] : vector<128x1xf32> -> vector<1x128xf32>
    %c0_7 = arith.constant 0 : index
    %c0_8 = arith.constant 0 : index
    %15 = vector.load %arg4[%c0_7, %c0_8] : memref<1x128xf32, #tpu.memory_space<vmem>>, vector<1x128xf32>
    tpu.vector_store %arg4[%c0_7, %c0_8], %14 {strides = array<i32>} : memref<1x128xf32, #tpu.memory_space<vmem>>, vector<1x128xf32>,
    return
  }
  func.func @transform_0(%arg0: i32) -> (i32, i32) {
    %c0_i32 = arith.constant 0 : i32
    %c0_i32_0 = arith.constant 0 : i32
    return %arg0, %c0_i32 : i32, i32
  }
  func.func @transform_1(%arg0: i32) -> (i32, i32) {
    %c0_i32 = arith.constant 0 : i32
    %c0_i32_0 = arith.constant 0 : i32
    return %arg0, %c0_i32 : i32, i32
  }
  func.func @transform_2(%arg0: i32) -> (i32, i32) {
    %c0_i32 = arith.constant 0 : i32
    %c0_i32_0 = arith.constant 0 : i32
    %c0_i32_1 = arith.constant 0 : i32
    return %c0_i32, %c0_i32_0 : i32, i32
  }
  func.func @transform_3(%arg0: i32) -> (i32, i32) {
    %c0_i32 = arith.constant 0 : i32
    %c0_i32_0 = arith.constant 0 : i32
    return %c0_i32, %arg0 : i32, i32
  }
}

</mosaic_0001>

<llo_original>
// kernel: trivial_distance_siamese.1
$region0: #{trivial_distance_siamese.1}
  #allocation0 [shape = 'u32[]', space=smem, size = 0x4, offset = 0x4, fixed_abs, tag = 'smem constant byte address 0x4 - core index']
  #allocation1 [shape = 'u32[144,128]{1,0:T(1,128)}', space=vmem, size = 0x12000, scoped, tag = 'internal scratch']
  %s0 = inlined_call_operand.vmem [shape: bf16[128,1024], index: 0, kind: input, shape index: {}]
  %s1 = inlined_call_operand.vmem [shape: bf16[128,1024], index: 1, kind: input, shape index: {}]
  %s2 = inlined_call_operand.vmem [shape: bf16[1024,32], index: 2, kind: input, shape index: {}]
  %s3 = inlined_call_operand.vmem [shape: f32[1,128], index: 3, kind: output, shape index: {}]
  %s4 = sld [smem:[#allocation0]]
  $region22: #{trivial_distance_siamese.1} parent=0
    _
  %s6 = ssub.s32 1, %s4
  %s7 = scalar_select 0, %s6, %s4
  // Predicated region
  $region2: #{trivial_distance_siamese.1} parent=0 // pred_check
    _
  $region3: #{trivial_distance_siamese.1} parent=0 // pred_check_branch
    %9 = sbr.rel (0) target = $region5
  $region4: #{trivial_distance_siamese.1} parent=0 // pred_region
    _
  $region5: #{trivial_distance_siamese.1} parent=0 // pred_fallthru
    _
  // Predicated region
  $region6: #{trivial_distance_siamese.1} parent=0 // pred_check
    _
  $region7: #{trivial_distance_siamese.1} parent=0 // pred_check_branch
    %11 = sbr.rel (0) target = $region9
  $region8: #{trivial_distance_siamese.1} parent=0 // pred_region
    _
  $region9: #{trivial_distance_siamese.1} parent=0 // pred_fallthru
    _
  // Predicated region
  $region10: #{trivial_distance_siamese.1} parent=0 // pred_check
    _
  $region11: #{trivial_distance_siamese.1} parent=0 // pred_check_branch
    %13 = sbr.rel (0) target = $region13
  $region12: #{trivial_distance_siamese.1} parent=0 // pred_region
    _
  $region13: #{trivial_distance_siamese.1} parent=0 // pred_fallthru
    _
  %v15 = vld [vmem:[%s0] sm:$0xff]
  %v16 = vld [vmem:[%s0 + $0x8] sm:$0xff]
  %v17 = vld [vmem:[%s0 + $0x10] sm:$0xff]
  %v18 = vld [vmem:[%s0 + $0x18] sm:$0xff]
  %v19 = vld [vmem:[%s0 + $0x20] sm:$0xff]
  %v20 = vld [vmem:[%s0 + $0x28] sm:$0xff]
  %v21 = vld [vmem:[%s0 + $0x30] sm:$0xff]
  %v22 = vld [vmem:[%s0 + $0x38] sm:$0xff]
  %v23 = vld [vmem:[%s0 + $0x40] sm:$0xff]
  %v24 = vld [vmem:[%s0 + $0x48] sm:$0xff]
  %v25 = vld [vmem:[%s0 + $0x50] sm:$0xff]
  %v26 = vld [vmem:[%s0 + $0x58] sm:$0xff]
  %v27 = vld [vmem:[%s0 + $0x60] sm:$0xff]
  %v28 = vld [vmem:[%s0 + $0x68] sm:$0xff]
  %v29 = vld [vmem:[%s0 + $0x70] sm:$0xff]
  %v30 = vld [vmem:[%s0 + $0x78] sm:$0xff]
  %v31 = vld [vmem:[%s0 + $0x80] sm:$0xff]
  %v32 = vld [vmem:[%s0 + $0x88] sm:$0xff]
  %v33 = vld [vmem:[%s0 + $0x90] sm:$0xff]
  %v34 = vld [vmem:[%s0 + $0x98] sm:$0xff]
  %v35 = vld [vmem:[%s0 + $0xa0] sm:$0xff]
  %v36 = vld [vmem:[%s0 + $0xa8] sm:$0xff]
  %v37 = vld [vmem:[%s0 + $0xb0] sm:$0xff]
  %v38 = vld [vmem:[%s0 + $0xb8] sm:$0xff]
  %v39 = vld [vmem:[%s0 + $0xc0] sm:$0xff]
  %v40 = vld [vmem:[%s0 + $0xc8] sm:$0xff]
  %v41 = vld [vmem:[%s0 + $0xd0] sm:$0xff]
  %v42 = vld [vmem:[%s0 + $0xd8] sm:$0xff]
  %v43 = vld [vmem:[%s0 + $0xe0] sm:$0xff]
  %v44 = vld [vmem:[%s0 + $0xe8] sm:$0xff]
  %v45 = vld [vmem:[%s0 + $0xf0] sm:$0xff]
  %v46 = vld [vmem:[%s0 + $0xf8] sm:$0xff]
  %v47 = vld [vmem:[%s0 + $0x100] sm:$0xff]
  %v48 = vld [vmem:[%s0 + $0x108] sm:$0xff]
  %v49 = vld [vmem:[%s0 + $0x110] sm:$0xff]
  %v50 = vld [vmem:[%s0 + $0x118] sm:$0xff]
  %v51 = vld [vmem:[%s0 + $0x120] sm:$0xff]
  %v52 = vld [vmem:[%s0 + $0x128] sm:$0xff]
  %v53 = vld [vmem:[%s0 + $0x130] sm:$0xff]
  %v54 = vld [vmem:[%s0 + $0x138] sm:$0xff]
  %v55 = vld [vmem:[%s0 + $0x140] sm:$0xff]
  %v56 = vld [vmem:[%s0 + $0x148] sm:$0xff]
  %v57 = vld [vmem:[%s0 + $0x150] sm:$0xff]
  %v58 = vld [vmem:[%s0 + $0x158] sm:$0xff]
  %v59 = vld [vmem:[%s0 + $0x160] sm:$0xff]
  %v60 = vld [vmem:[%s0 + $0x168] sm:$0xff]
  %v61 = vld [vmem:[%s0 + $0x170] sm:$0xff]
  %v62 = vld [vmem:[%s0 + $0x178] sm:$0xff]
  %v63 = vld [vmem:[%s0 + $0x180] sm:$0xff]
  %v64 = vld [vmem:[%s0 + $0x188] sm:$0xff]
  %v65 = vld [vmem:[%s0 + $0x190] sm:$0xff]
  %v66 = vld [vmem:[%s0 + $0x198] sm:$0xff]
  %v67 = vld [vmem:[%s0 + $0x1a0] sm:$0xff]
  %v68 = vld [vmem:[%s0 + $0x1a8] sm:$0xff]
  %v69 = vld [vmem:[%s0 + $0x1b0] sm:$0xff]
  %v70 = vld [vmem:[%s0 + $0x1b8] sm:$0xff]
  %v71 = vld [vmem:[%s0 + $0x1c0] sm:$0xff]
  %v72 = vld [vmem:[%s0 + $0x1c8] sm:$0xff]
  %v73 = vld [vmem:[%s0 + $0x1d0] sm:$0xff]
  %v74 = vld [vmem:[%s0 + $0x1d8] sm:$0xff]
  %v75 = vld [vmem:[%s0 + $0x1e0] sm:$0xff]
  %v76 = vld [vmem:[%s0 + $0x1e8] sm:$0xff]
  %v77 = vld [vmem:[%s0 + $0x1f0] sm:$0xff]
  %v78 = vld [vmem:[%s0 + $0x1f8] sm:$0xff]
  %v79 = vunpack.c.l.bf16 %v15
  %v80 = vunpack.c.h.bf16 %v15
  %v81 = vunpack.c.l.bf16 %v16
  %v82 = vunpack.c.h.bf16 %v16
  %v83 = vunpack.c.l.bf16 %v17
  %v84 = vunpack.c.h.bf16 %v17
  %v85 = vunpack.c.l.bf16 %v18
  %v86 = vunpack.c.h.bf16 %v18
  %v87 = vunpack.c.l.bf16 %v19
  %v88 = vunpack.c.h.bf16 %v19
  %v89 = vunpack.c.l.bf16 %v20
  %v90 = vunpack.c.h.bf16 %v20
  %v91 = vunpack.c.l.bf16 %v21
  %v92 = vunpack.c.h.bf16 %v21
  %v93 = vunpack.c.l.bf16 %v22
  %v94 = vunpack.c.h.bf16 %v22
  %v95 = vunpack.c.l.bf16 %v23
  %v96 = vunpack.c.h.bf16 %v23
  %v97 = vunpack.c.l.bf16 %v24
  %v98 = vunpack.c.h.bf16 %v24
  %v99 = vunpack.c.l.bf16 %v25
  %v100 = vunpack.c.h.bf16 %v25
  %v101 = vunpack.c.l.bf16 %v26
  %v102 = vunpack.c.h.bf16 %v26
  %v103 = vunpack.c.l.bf16 %v27
  %v104 = vunpack.c.h.bf16 %v27
  %v105 = vunpack.c.l.bf16 %v28
  %v106 = vunpack.c.h.bf16 %v28
  %v107 = vunpack.c.l.bf16 %v29
  %v108 = vunpack.c.h.bf16 %v29
  %v109 = vunpack.c.l.bf16 %v30
  %v110 = vunpack.c.h.bf16 %v30
  %v111 = vunpack.c.l.bf16 %v31
  %v112 = vunpack.c.h.bf16 %v31
  %v113 = vunpack.c.l.bf16 %v32
  %v114 = vunpack.c.h.bf16 %v32
  %v115 = vunpack.c.l.bf16 %v33
  %v116 = vunpack.c.h.bf16 %v33
  %v117 = vunpack.c.l.bf16 %v34
  %v118 = vunpack.c.h.bf16 %v34
  %v119 = vunpack.c.l.bf16 %v35
  %v120 = vunpack.c.h.bf16 %v35
  %v121 = vunpack.c.l.bf16 %v36
  %v122 = vunpack.c.h.bf16 %v36
  %v123 = vunpack.c.l.bf16 %v37
  %v124 = vunpack.c.h.bf16 %v37
  %v125 = vunpack.c.l.bf16 %v38
  %v126 = vunpack.c.h.bf16 %v38
  %v127 = vunpack.c.l.bf16 %v39
  %v128 = vunpack.c.h.bf16 %v39
  %v129 = vunpack.c.l.bf16 %v40
  %v130 = vunpack.c.h.bf16 %v40
  %v131 = vunpack.c.l.bf16 %v41
  %v132 = vunpack.c.h.bf16 %v41
  %v133 = vunpack.c.l.bf16 %v42
  %v134 = vunpack.c.h.bf16 %v42
  %v135 = vunpack.c.l.bf16 %v43
  %v136 = vunpack.c.h.bf16 %v43
  %v137 = vunpack.c.l.bf16 %v44
  %v138 = vunpack.c.h.bf16 %v44
  %v139 = vunpack.c.l.bf16 %v45
  %v140 = vunpack.c.h.bf16 %v45
  %v141 = vunpack.c.l.bf16 %v46
  %v142 = vunpack.c.h.bf16 %v46
  %v143 = vunpack.c.l.bf16 %v47
  %v144 = vunpack.c.h.bf16 %v47
  %v145 = vunpack.c.l.bf16 %v48
  %v146 = vunpack.c.h.bf16 %v48
  %v147 = vunpack.c.l.bf16 %v49
  %v148 = vunpack.c.h.bf16 %v49
  %v149 = vunpack.c.l.bf16 %v50
  %v150 = vunpack.c.h.bf16 %v50
  %v151 = vunpack.c.l.bf16 %v51
  %v152 = vunpack.c.h.bf16 %v51
  %v153 = vunpack.c.l.bf16 %v52
  %v154 = vunpack.c.h.bf16 %v52
  %v155 = vunpack.c.l.bf16 %v53
  %v156 = vunpack.c.h.bf16 %v53
  %v157 = vunpack.c.l.bf16 %v54
  %v158 = vunpack.c.h.bf16 %v54
  %v159 = vunpack.c.l.bf16 %v55
  %v160 = vunpack.c.h.bf16 %v55
  %v161 = vunpack.c.l.bf16 %v56
  %v162 = vunpack.c.h.bf16 %v56
  %v163 = vunpack.c.l.bf16 %v57
  %v164 = vunpack.c.h.bf16 %v57
  %v165 = vunpack.c.l.bf16 %v58
  %v166 = vunpack.c.h.bf16 %v58
  %v167 = vunpack.c.l.bf16 %v59
  %v168 = vunpack.c.h.bf16 %v59
  %v169 = vunpack.c.l.bf16 %v60
  %v170 = vunpack.c.h.bf16 %v60
  %v171 = vunpack.c.l.bf16 %v61
  %v172 = vunpack.c.h.bf16 %v61
  %v173 = vunpack.c.l.bf16 %v62
  %v174 = vunpack.c.h.bf16 %v62
  %v175 = vunpack.c.l.bf16 %v63
  %v176 = vunpack.c.h.bf16 %v63
  %v177 = vunpack.c.l.bf16 %v64
  %v178 = vunpack.c.h.bf16 %v64
  %v179 = vunpack.c.l.bf16 %v65
  %v180 = vunpack.c.h.bf16 %v65
  %v181 = vunpack.c.l.bf16 %v66
  %v182 = vunpack.c.h.bf16 %v66
  %v183 = vunpack.c.l.bf16 %v67
  %v184 = vunpack.c.h.bf16 %v67
  %v185 = vunpack.c.l.bf16 %v68
  %v186 = vunpack.c.h.bf16 %v68
  %v187 = vunpack.c.l.bf16 %v69
  %v188 = vunpack.c.h.bf16 %v69
  %v189 = vunpack.c.l.bf16 %v70
  %v190 = vunpack.c.h.bf16 %v70
  %v191 = vunpack.c.l.bf16 %v71
  %v192 = vunpack.c.h.bf16 %v71
  %v193 = vunpack.c.l.bf16 %v72
  %v194 = vunpack.c.h.bf16 %v72
  %v195 = vunpack.c.l.bf16 %v73
  %v196 = vunpack.c.h.bf16 %v73
  %v197 = vunpack.c.l.bf16 %v74
  %v198 = vunpack.c.h.bf16 %v74
  %v199 = vunpack.c.l.bf16 %v75
  %v200 = vunpack.c.h.bf16 %v75
  %v201 = vunpack.c.l.bf16 %v76
  %v202 = vunpack.c.h.bf16 %v76
  %v203 = vunpack.c.l.bf16 %v77
  %v204 = vunpack.c.h.bf16 %v77
  %v205 = vunpack.c.l.bf16 %v78
  %v206 = vunpack.c.h.bf16 %v78
  %v207 = vld [vmem:[%s1] sm:$0xff]
  %v208 = vld [vmem:[%s1 + $0x8] sm:$0xff]
  %v209 = vld [vmem:[%s1 + $0x10] sm:$0xff]
  %v210 = vld [vmem:[%s1 + $0x18] sm:$0xff]
  %v211 = vld [vmem:[%s1 + $0x20] sm:$0xff]
  %v212 = vld [vmem:[%s1 + $0x28] sm:$0xff]
  %v213 = vld [vmem:[%s1 + $0x30] sm:$0xff]
  %v214 = vld [vmem:[%s1 + $0x38] sm:$0xff]
  %v215 = vld [vmem:[%s1 + $0x40] sm:$0xff]
  %v216 = vld [vmem:[%s1 + $0x48] sm:$0xff]
  %v217 = vld [vmem:[%s1 + $0x50] sm:$0xff]
  %v218 = vld [vmem:[%s1 + $0x58] sm:$0xff]
  %v219 = vld [vmem:[%s1 + $0x60] sm:$0xff]
  %v220 = vld [vmem:[%s1 + $0x68] sm:$0xff]
  %v221 = vld [vmem:[%s1 + $0x70] sm:$0xff]
  %v222 = vld [vmem:[%s1 + $0x78] sm:$0xff]
  %v223 = vld [vmem:[%s1 + $0x80] sm:$0xff]
  %v224 = vld [vmem:[%s1 + $0x88] sm:$0xff]
  %v225 = vld [vmem:[%s1 + $0x90] sm:$0xff]
  %v226 = vld [vmem:[%s1 + $0x98] sm:$0xff]
  %v227 = vld [vmem:[%s1 + $0xa0] sm:$0xff]
  %v228 = vld [vmem:[%s1 + $0xa8] sm:$0xff]
  %v229 = vld [vmem:[%s1 + $0xb0] sm:$0xff]
  %v230 = vld [vmem:[%s1 + $0xb8] sm:$0xff]
  %v231 = vld [vmem:[%s1 + $0xc0] sm:$0xff]
  %v232 = vld [vmem:[%s1 + $0xc8] sm:$0xff]
  %v233 = vld [vmem:[%s1 + $0xd0] sm:$0xff]
  %v234 = vld [vmem:[%s1 + $0xd8] sm:$0xff]
  %v235 = vld [vmem:[%s1 + $0xe0] sm:$0xff]
  %v236 = vld [vmem:[%s1 + $0xe8] sm:$0xff]
  %v237 = vld [vmem:[%s1 + $0xf0] sm:$0xff]
  %v238 = vld [vmem:[%s1 + $0xf8] sm:$0xff]
  %v239 = vld [vmem:[%s1 + $0x100] sm:$0xff]
  %v240 = vld [vmem:[%s1 + $0x108] sm:$0xff]
  %v241 = vld [vmem:[%s1 + $0x110] sm:$0xff]
  %v242 = vld [vmem:[%s1 + $0x118] sm:$0xff]
  %v243 = vld [vmem:[%s1 + $0x120] sm:$0xff]
  %v244 = vld [vmem:[%s1 + $0x128] sm:$0xff]
  %v245 = vld [vmem:[%s1 + $0x130] sm:$0xff]
  %v246 = vld [vmem:[%s1 + $0x138] sm:$0xff]
  %v247 = vld [vmem:[%s1 + $0x140] sm:$0xff]
  %v248 = vld [vmem:[%s1 + $0x148] sm:$0xff]
  %v249 = vld [vmem:[%s1 + $0x150] sm:$0xff]
  %v250 = vld [vmem:[%s1 + $0x158] sm:$0xff]
  %v251 = vld [vmem:[%s1 + $0x160] sm:$0xff]
  %v252 = vld [vmem:[%s1 + $0x168] sm:$0xff]
  %v253 = vld [vmem:[%s1 + $0x170] sm:$0xff]
  %v254 = vld [vmem:[%s1 + $0x178] sm:$0xff]
  %v255 = vld [vmem:[%s1 + $0x180] sm:$0xff]
  %v256 = vld [vmem:[%s1 + $0x188] sm:$0xff]
  %v257 = vld [vmem:[%s1 + $0x190] sm:$0xff]
  %v258 = vld [vmem:[%s1 + $0x198] sm:$0xff]
  %v259 = vld [vmem:[%s1 + $0x1a0] sm:$0xff]
  %v260 = vld [vmem:[%s1 + $0x1a8] sm:$0xff]
  %v261 = vld [vmem:[%s1 + $0x1b0] sm:$0xff]
  %v262 = vld [vmem:[%s1 + $0x1b8] sm:$0xff]
  %v263 = vld [vmem:[%s1 + $0x1c0] sm:$0xff]
  %v264 = vld [vmem:[%s1 + $0x1c8] sm:$0xff]
  %v265 = vld [vmem:[%s1 + $0x1d0] sm:$0xff]
  %v266 = vld [vmem:[%s1 + $0x1d8] sm:$0xff]
  %v267 = vld [vmem:[%s1 + $0x1e0] sm:$0xff]
  %v268 = vld [vmem:[%s1 + $0x1e8] sm:$0xff]
  %v269 = vld [vmem:[%s1 + $0x1f0] sm:$0xff]
  %v270 = vld [vmem:[%s1 + $0x1f8] sm:$0xff]
  %v271 = vunpack.c.l.bf16 %v207
  %v272 = vunpack.c.h.bf16 %v207
  %v273 = vunpack.c.l.bf16 %v208
  %v274 = vunpack.c.h.bf16 %v208
  %v275 = vunpack.c.l.bf16 %v209
  %v276 = vunpack.c.h.bf16 %v209
  %v277 = vunpack.c.l.bf16 %v210
  %v278 = vunpack.c.h.bf16 %v210
  %v279 = vunpack.c.l.bf16 %v211
  %v280 = vunpack.c.h.bf16 %v211
  %v281 = vunpack.c.l.bf16 %v212
  %v282 = vunpack.c.h.bf16 %v212
  %v283 = vunpack.c.l.bf16 %v213
  %v284 = vunpack.c.h.bf16 %v213
  %v285 = vunpack.c.l.bf16 %v214
  %v286 = vunpack.c.h.bf16 %v214
  %v287 = vunpack.c.l.bf16 %v215
  %v288 = vunpack.c.h.bf16 %v215
  %v289 = vunpack.c.l.bf16 %v216
  %v290 = vunpack.c.h.bf16 %v216
  %v291 = vunpack.c.l.bf16 %v217
  %v292 = vunpack.c.h.bf16 %v217
  %v293 = vunpack.c.l.bf16 %v218
  %v294 = vunpack.c.h.bf16 %v218
  %v295 = vunpack.c.l.bf16 %v219
  %v296 = vunpack.c.h.bf16 %v219
  %v297 = vunpack.c.l.bf16 %v220
  %v298 = vunpack.c.h.bf16 %v220
  %v299 = vunpack.c.l.bf16 %v221
  %v300 = vunpack.c.h.bf16 %v221
  %v301 = vunpack.c.l.bf16 %v222
  %v302 = vunpack.c.h.bf16 %v222
  %v303 = vunpack.c.l.bf16 %v223
  %v304 = vunpack.c.h.bf16 %v223
  %v305 = vunpack.c.l.bf16 %v224
  %v306 = vunpack.c.h.bf16 %v224
  %v307 = vunpack.c.l.bf16 %v225
  %v308 = vunpack.c.h.bf16 %v225
  %v309 = vunpack.c.l.bf16 %v226
  %v310 = vunpack.c.h.bf16 %v226
  %v311 = vunpack.c.l.bf16 %v227
  %v312 = vunpack.c.h.bf16 %v227
  %v313 = vunpack.c.l.bf16 %v228
  %v314 = vunpack.c.h.bf16 %v228
  %v315 = vunpack.c.l.bf16 %v229
  %v316 = vunpack.c.h.bf16 %v229
  %v317 = vunpack.c.l.bf16 %v230
  %v318 = vunpack.c.h.bf16 %v230
  %v319 = vunpack.c.l.bf16 %v231
  %v320 = vunpack.c.h.bf16 %v231
  %v321 = vunpack.c.l.bf16 %v232
  %v322 = vunpack.c.h.bf16 %v232
  %v323 = vunpack.c.l.bf16 %v233
  %v324 = vunpack.c.h.bf16 %v233
  %v325 = vunpack.c.l.bf16 %v234
  %v326 = vunpack.c.h.bf16 %v234
  %v327 = vunpack.c.l.bf16 %v235
  %v328 = vunpack.c.h.bf16 %v235
  %v329 = vunpack.c.l.bf16 %v236
  %v330 = vunpack.c.h.bf16 %v236
  %v331 = vunpack.c.l.bf16 %v237
  %v332 = vunpack.c.h.bf16 %v237
  %v333 = vunpack.c.l.bf16 %v238
  %v334 = vunpack.c.h.bf16 %v238
  %v335 = vunpack.c.l.bf16 %v239
  %v336 = vunpack.c.h.bf16 %v239
  %v337 = vunpack.c.l.bf16 %v240
  %v338 = vunpack.c.h.bf16 %v240
  %v339 = vunpack.c.l.bf16 %v241
  %v340 = vunpack.c.h.bf16 %v241
  %v341 = vunpack.c.l.bf16 %v242
  %v342 = vunpack.c.h.bf16 %v242
  %v343 = vunpack.c.l.bf16 %v243
  %v344 = vunpack.c.h.bf16 %v243
  %v345 = vunpack.c.l.bf16 %v244
  %v346 = vunpack.c.h.bf16 %v244
  %v347 = vunpack.c.l.bf16 %v245
  %v348 = vunpack.c.h.bf16 %v245
  %v349 = vunpack.c.l.bf16 %v246
  %v350 = vunpack.c.h.bf16 %v246
  %v351 = vunpack.c.l.bf16 %v247
  %v352 = vunpack.c.h.bf16 %v247
  %v353 = vunpack.c.l.bf16 %v248
  %v354 = vunpack.c.h.bf16 %v248
  %v355 = vunpack.c.l.bf16 %v249
  %v356 = vunpack.c.h.bf16 %v249
  %v357 = vunpack.c.l.bf16 %v250
  %v358 = vunpack.c.h.bf16 %v250
  %v359 = vunpack.c.l.bf16 %v251
  %v360 = vunpack.c.h.bf16 %v251
  %v361 = vunpack.c.l.bf16 %v252
  %v362 = vunpack.c.h.bf16 %v252
  %v363 = vunpack.c.l.bf16 %v253
  %v364 = vunpack.c.h.bf16 %v253
  %v365 = vunpack.c.l.bf16 %v254
  %v366 = vunpack.c.h.bf16 %v254
  %v367 = vunpack.c.l.bf16 %v255
  %v368 = vunpack.c.h.bf16 %v255
  %v369 = vunpack.c.l.bf16 %v256
  %v370 = vunpack.c.h.bf16 %v256
  %v371 = vunpack.c.l.bf16 %v257
  %v372 = vunpack.c.h.bf16 %v257
  %v373 = vunpack.c.l.bf16 %v258
  %v374 = vunpack.c.h.bf16 %v258
  %v375 = vunpack.c.l.bf16 %v259
  %v376 = vunpack.c.h.bf16 %v259
  %v377 = vunpack.c.l.bf16 %v260
  %v378 = vunpack.c.h.bf16 %v260
  %v379 = vunpack.c.l.bf16 %v261
  %v380 = vunpack.c.h.bf16 %v261
  %v381 = vunpack.c.l.bf16 %v262
  %v382 = vunpack.c.h.bf16 %v262
  %v383 = vunpack.c.l.bf16 %v263
  %v384 = vunpack.c.h.bf16 %v263
  %v385 = vunpack.c.l.bf16 %v264
  %v386 = vunpack.c.h.bf16 %v264
  %v387 = vunpack.c.l.bf16 %v265
  %v388 = vunpack.c.h.bf16 %v265
  %v389 = vunpack.c.l.bf16 %v266
  %v390 = vunpack.c.h.bf16 %v266
  %v391 = vunpack.c.l.bf16 %v267
  %v392 = vunpack.c.h.bf16 %v267
  %v393 = vunpack.c.l.bf16 %v268
  %v394 = vunpack.c.h.bf16 %v268
  %v395 = vunpack.c.l.bf16 %v269
  %v396 = vunpack.c.h.bf16 %v269
  %v397 = vunpack.c.l.bf16 %v270
  %v398 = vunpack.c.h.bf16 %v270
  %v399 = vsub.f32 %v79, %v271
  %v400 = vsub.f32 %v80, %v272
  %v401 = vsub.f32 %v81, %v273
  %v402 = vsub.f32 %v82, %v274
  %v403 = vsub.f32 %v83, %v275
  %v404 = vsub.f32 %v84, %v276
  %v405 = vsub.f32 %v85, %v277
  %v406 = vsub.f32 %v86, %v278
  %v407 = vsub.f32 %v87, %v279
  %v408 = vsub.f32 %v88, %v280
  %v409 = vsub.f32 %v89, %v281
  %v410 = vsub.f32 %v90, %v282
  %v411 = vsub.f32 %v91, %v283
  %v412 = vsub.f32 %v92, %v284
  %v413 = vsub.f32 %v93, %v285
  %v414 = vsub.f32 %v94, %v286
  %v415 = vsub.f32 %v95, %v287
  %v416 = vsub.f32 %v96, %v288
  %v417 = vsub.f32 %v97, %v289
  %v418 = vsub.f32 %v98, %v290
  %v419 = vsub.f32 %v99, %v291
  %v420 = vsub.f32 %v100, %v292
  %v421 = vsub.f32 %v101, %v293
  %v422 = vsub.f32 %v102, %v294
  %v423 = vsub.f32 %v103, %v295
  %v424 = vsub.f32 %v104, %v296
  %v425 = vsub.f32 %v105, %v297
  %v426 = vsub.f32 %v106, %v298
  %v427 = vsub.f32 %v107, %v299
  %v428 = vsub.f32 %v108, %v300
  %v429 = vsub.f32 %v109, %v301
  %v430 = vsub.f32 %v110, %v302
  %v431 = vsub.f32 %v111, %v303
  %v432 = vsub.f32 %v112, %v304
  %v433 = vsub.f32 %v113, %v305
  %v434 = vsub.f32 %v114, %v306
  %v435 = vsub.f32 %v115, %v307
  %v436 = vsub.f32 %v116, %v308
  %v437 = vsub.f32 %v117, %v309
  %v438 = vsub.f32 %v118, %v310
  %v439 = vsub.f32 %v119, %v311
  %v440 = vsub.f32 %v120, %v312
  %v441 = vsub.f32 %v121, %v313
  %v442 = vsub.f32 %v122, %v314
  %v443 = vsub.f32 %v123, %v315
  %v444 = vsub.f32 %v124, %v316
  %v445 = vsub.f32 %v125, %v317
  %v446 = vsub.f32 %v126, %v318
  %v447 = vsub.f32 %v127, %v319
  %v448 = vsub.f32 %v128, %v320
  %v449 = vsub.f32 %v129, %v321
  %v450 = vsub.f32 %v130, %v322
  %v451 = vsub.f32 %v131, %v323
  %v452 = vsub.f32 %v132, %v324
  %v453 = vsub.f32 %v133, %v325
  %v454 = vsub.f32 %v134, %v326
  %v455 = vsub.f32 %v135, %v327
  %v456 = vsub.f32 %v136, %v328
  %v457 = vsub.f32 %v137, %v329
  %v458 = vsub.f32 %v138, %v330
  %v459 = vsub.f32 %v139, %v331
  %v460 = vsub.f32 %v140, %v332
  %v461 = vsub.f32 %v141, %v333
  %v462 = vsub.f32 %v142, %v334
  %v463 = vsub.f32 %v143, %v335
  %v464 = vsub.f32 %v144, %v336
  %v465 = vsub.f32 %v145, %v337
  %v466 = vsub.f32 %v146, %v338
  %v467 = vsub.f32 %v147, %v339
  %v468 = vsub.f32 %v148, %v340
  %v469 = vsub.f32 %v149, %v341
  %v470 = vsub.f32 %v150, %v342
  %v471 = vsub.f32 %v151, %v343
  %v472 = vsub.f32 %v152, %v344
  %v473 = vsub.f32 %v153, %v345
  %v474 = vsub.f32 %v154, %v346
  %v475 = vsub.f32 %v155, %v347
  %v476 = vsub.f32 %v156, %v348
  %v477 = vsub.f32 %v157, %v349
  %v478 = vsub.f32 %v158, %v350
  %v479 = vsub.f32 %v159, %v351
  %v480 = vsub.f32 %v160, %v352
  %v481 = vsub.f32 %v161, %v353
  %v482 = vsub.f32 %v162, %v354
  %v483 = vsub.f32 %v163, %v355
  %v484 = vsub.f32 %v164, %v356
  %v485 = vsub.f32 %v165, %v357
  %v486 = vsub.f32 %v166, %v358
  %v487 = vsub.f32 %v167, %v359
  %v488 = vsub.f32 %v168, %v360
  %v489 = vsub.f32 %v169, %v361
  %v490 = vsub.f32 %v170, %v362
  %v491 = vsub.f32 %v171, %v363
  %v492 = vsub.f32 %v172, %v364
  %v493 = vsub.f32 %v173, %v365
  %v494 = vsub.f32 %v174, %v366
  %v495 = vsub.f32 %v175, %v367
  %v496 = vsub.f32 %v176, %v368
  %v497 = vsub.f32 %v177, %v369
  %v498 = vsub.f32 %v178, %v370
  %v499 = vsub.f32 %v179, %v371
  %v500 = vsub.f32 %v180, %v372
  %v501 = vsub.f32 %v181, %v373
  %v502 = vsub.f32 %v182, %v374
  %v503 = vsub.f32 %v183, %v375
  %v504 = vsub.f32 %v184, %v376
  %v505 = vsub.f32 %v185, %v377
  %v506 = vsub.f32 %v186, %v378
  %v507 = vsub.f32 %v187, %v379
  %v508 = vsub.f32 %v188, %v380
  %v509 = vsub.f32 %v189, %v381
  %v510 = vsub.f32 %v190, %v382
  %v511 = vsub.f32 %v191, %v383
  %v512 = vsub.f32 %v192, %v384
  %v513 = vsub.f32 %v193, %v385
  %v514 = vsub.f32 %v194, %v386
  %v515 = vsub.f32 %v195, %v387
  %v516 = vsub.f32 %v196, %v388
  %v517 = vsub.f32 %v197, %v389
  %v518 = vsub.f32 %v198, %v390
  %v519 = vsub.f32 %v199, %v391
  %v520 = vsub.f32 %v200, %v392
  %v521 = vsub.f32 %v201, %v393
  %v522 = vsub.f32 %v202, %v394
  %v523 = vsub.f32 %v203, %v395
  %v524 = vsub.f32 %v204, %v396
  %v525 = vsub.f32 %v205, %v397
  %v526 = vsub.f32 %v206, %v398
  %v527 = vpack.c.bf16 %v407, %v399
  %v528 = vpack.c.bf16 %v408, %v400
  %v529 = vpack.c.bf16 %v409, %v401
  %v530 = vpack.c.bf16 %v410, %v402
  %v531 = vpack.c.bf16 %v411, %v403
  %v532 = vpack.c.bf16 %v412, %v404
  %v533 = vpack.c.bf16 %v413, %v405
  %v534 = vpack.c.bf16 %v414, %v406
  %v535 = vpack.c.bf16 %v423, %v415
  %v536 = vpack.c.bf16 %v424, %v416
  %v537 = vpack.c.bf16 %v425, %v417
  %v538 = vpack.c.bf16 %v426, %v418
  %v539 = vpack.c.bf16 %v427, %v419
  %v540 = vpack.c.bf16 %v428, %v420
  %v541 = vpack.c.bf16 %v429, %v421
  %v542 = vpack.c.bf16 %v430, %v422
  %v543 = vpack.c.bf16 %v439, %v431
  %v544 = vpack.c.bf16 %v440, %v432
  %v545 = vpack.c.bf16 %v441, %v433
  %v546 = vpack.c.bf16 %v442, %v434
  %v547 = vpack.c.bf16 %v443, %v435
  %v548 = vpack.c.bf16 %v444, %v436
  %v549 = vpack.c.bf16 %v445, %v437
  %v550 = vpack.c.bf16 %v446, %v438
  %v551 = vpack.c.bf16 %v455, %v447
  %v552 = vpack.c.bf16 %v456, %v448
  %v553 = vpack.c.bf16 %v457, %v449
  %v554 = vpack.c.bf16 %v458, %v450
  %v555 = vpack.c.bf16 %v459, %v451
  %v556 = vpack.c.bf16 %v460, %v452
  %v557 = vpack.c.bf16 %v461, %v453
  %v558 = vpack.c.bf16 %v462, %v454
  %v559 = vpack.c.bf16 %v471, %v463
  %v560 = vpack.c.bf16 %v472, %v464
  %v561 = vpack.c.bf16 %v473, %v465
  %v562 = vpack.c.bf16 %v474, %v466
  %v563 = vpack.c.bf16 %v475, %v467
  %v564 = vpack.c.bf16 %v476, %v468
  %v565 = vpack.c.bf16 %v477, %v469
  %v566 = vpack.c.bf16 %v478, %v470
  %v567 = vpack.c.bf16 %v487, %v479
  %v568 = vpack.c.bf16 %v488, %v480
  %v569 = vpack.c.bf16 %v489, %v481
  %v570 = vpack.c.bf16 %v490, %v482
  %v571 = vpack.c.bf16 %v491, %v483
  %v572 = vpack.c.bf16 %v492, %v484
  %v573 = vpack.c.bf16 %v493, %v485
  %v574 = vpack.c.bf16 %v494, %v486
  %v575 = vpack.c.bf16 %v503, %v495
  %v576 = vpack.c.bf16 %v504, %v496
  %v577 = vpack.c.bf16 %v505, %v497
  %v578 = vpack.c.bf16 %v506, %v498
  %v579 = vpack.c.bf16 %v507, %v499
  %v580 = vpack.c.bf16 %v508, %v500
  %v581 = vpack.c.bf16 %v509, %v501
  %v582 = vpack.c.bf16 %v510, %v502
  %v583 = vpack.c.bf16 %v519, %v511
  %v584 = vpack.c.bf16 %v520, %v512
  %v585 = vpack.c.bf16 %v521, %v513
  %v586 = vpack.c.bf16 %v522, %v514
  %v587 = vpack.c.bf16 %v523, %v515
  %v588 = vpack.c.bf16 %v524, %v516
  %v589 = vpack.c.bf16 %v525, %v517
  %v590 = vpack.c.bf16 %v526, %v518
  %v591 = vld [vmem:[%s2] sm:$0xf]
  %v592 = vld [vmem:[%s2 + $0x4] sm:$0xf]
  %v593 = vld [vmem:[%s2 + $0x8] sm:$0xf]
  %v594 = vld [vmem:[%s2 + $0xc] sm:$0xf]
  %v595 = vld [vmem:[%s2 + $0x10] sm:$0xf]
  %v596 = vld [vmem:[%s2 + $0x14] sm:$0xf]
  %v597 = vld [vmem:[%s2 + $0x18] sm:$0xf]
  %v598 = vld [vmem:[%s2 + $0x1c] sm:$0xf]
  %v599 = vld [vmem:[%s2 + $0x20] sm:$0xf]
  %v600 = vld [vmem:[%s2 + $0x24] sm:$0xf]
  %v601 = vld [vmem:[%s2 + $0x28] sm:$0xf]
  %v602 = vld [vmem:[%s2 + $0x2c] sm:$0xf]
  %v603 = vld [vmem:[%s2 + $0x30] sm:$0xf]
  %v604 = vld [vmem:[%s2 + $0x34] sm:$0xf]
  %v605 = vld [vmem:[%s2 + $0x38] sm:$0xf]
  %v606 = vld [vmem:[%s2 + $0x3c] sm:$0xf]
  %v607 = vld [vmem:[%s2 + $0x40] sm:$0xf]
  %v608 = vld [vmem:[%s2 + $0x44] sm:$0xf]
  %v609 = vld [vmem:[%s2 + $0x48] sm:$0xf]
  %v610 = vld [vmem:[%s2 + $0x4c] sm:$0xf]
  %v611 = vld [vmem:[%s2 + $0x50] sm:$0xf]
  %v612 = vld [vmem:[%s2 + $0x54] sm:$0xf]
  %v613 = vld [vmem:[%s2 + $0x58] sm:$0xf]
  %v614 = vld [vmem:[%s2 + $0x5c] sm:$0xf]
  %v615 = vld [vmem:[%s2 + $0x60] sm:$0xf]
  %v616 = vld [vmem:[%s2 + $0x64] sm:$0xf]
  %v617 = vld [vmem:[%s2 + $0x68] sm:$0xf]
  %v618 = vld [vmem:[%s2 + $0x6c] sm:$0xf]
  %v619 = vld [vmem:[%s2 + $0x70] sm:$0xf]
  %v620 = vld [vmem:[%s2 + $0x74] sm:$0xf]
  %v621 = vld [vmem:[%s2 + $0x78] sm:$0xf]
  %v622 = vld [vmem:[%s2 + $0x7c] sm:$0xf]
  %v623 = vld [vmem:[%s2 + $0x80] sm:$0xf]
  %v624 = vld [vmem:[%s2 + $0x84] sm:$0xf]
  %v625 = vld [vmem:[%s2 + $0x88] sm:$0xf]
  %v626 = vld [vmem:[%s2 + $0x8c] sm:$0xf]
  %v627 = vld [vmem:[%s2 + $0x90] sm:$0xf]
  %v628 = vld [vmem:[%s2 + $0x94] sm:$0xf]
  %v629 = vld [vmem:[%s2 + $0x98] sm:$0xf]
  %v630 = vld [vmem:[%s2 + $0x9c] sm:$0xf]
  %v631 = vld [vmem:[%s2 + $0xa0] sm:$0xf]
  %v632 = vld [vmem:[%s2 + $0xa4] sm:$0xf]
  %v633 = vld [vmem:[%s2 + $0xa8] sm:$0xf]
  %v634 = vld [vmem:[%s2 + $0xac] sm:$0xf]
  %v635 = vld [vmem:[%s2 + $0xb0] sm:$0xf]
  %v636 = vld [vmem:[%s2 + $0xb4] sm:$0xf]
  %v637 = vld [vmem:[%s2 + $0xb8] sm:$0xf]
  %v638 = vld [vmem:[%s2 + $0xbc] sm:$0xf]
  %v639 = vld [vmem:[%s2 + $0xc0] sm:$0xf]
  %v640 = vld [vmem:[%s2 + $0xc4] sm:$0xf]
  %v641 = vld [vmem:[%s2 + $0xc8] sm:$0xf]
  %v642 = vld [vmem:[%s2 + $0xcc] sm:$0xf]
  %v643 = vld [vmem:[%s2 + $0xd0] sm:$0xf]
  %v644 = vld [vmem:[%s2 + $0xd4] sm:$0xf]
  %v645 = vld [vmem:[%s2 + $0xd8] sm:$0xf]
  %v646 = vld [vmem:[%s2 + $0xdc] sm:$0xf]
  %v647 = vld [vmem:[%s2 + $0xe0] sm:$0xf]
  %v648 = vld [vmem:[%s2 + $0xe4] sm:$0xf]
  %v649 = vld [vmem:[%s2 + $0xe8] sm:$0xf]
  %v650 = vld [vmem:[%s2 + $0xec] sm:$0xf]
  %v651 = vld [vmem:[%s2 + $0xf0] sm:$0xf]
  %v652 = vld [vmem:[%s2 + $0xf4] sm:$0xf]
  %v653 = vld [vmem:[%s2 + $0xf8] sm:$0xf]
  %v654 = vld [vmem:[%s2 + $0xfc] sm:$0xf]
  %v655 = vld [vmem:[%s2 + $0x100] sm:$0xf]
  %v656 = vld [vmem:[%s2 + $0x104] sm:$0xf]
  %v657 = vld [vmem:[%s2 + $0x108] sm:$0xf]
  %v658 = vld [vmem:[%s2 + $0x10c] sm:$0xf]
  %v659 = vld [vmem:[%s2 + $0x110] sm:$0xf]
  %v660 = vld [vmem:[%s2 + $0x114] sm:$0xf]
  %v661 = vld [vmem:[%s2 + $0x118] sm:$0xf]
  %v662 = vld [vmem:[%s2 + $0x11c] sm:$0xf]
  %v663 = vld [vmem:[%s2 + $0x120] sm:$0xf]
  %v664 = vld [vmem:[%s2 + $0x124] sm:$0xf]
  %v665 = vld [vmem:[%s2 + $0x128] sm:$0xf]
  %v666 = vld [vmem:[%s2 + $0x12c] sm:$0xf]
  %v667 = vld [vmem:[%s2 + $0x130] sm:$0xf]
  %v668 = vld [vmem:[%s2 + $0x134] sm:$0xf]
  %v669 = vld [vmem:[%s2 + $0x138] sm:$0xf]
  %v670 = vld [vmem:[%s2 + $0x13c] sm:$0xf]
  %v671 = vld [vmem:[%s2 + $0x140] sm:$0xf]
  %v672 = vld [vmem:[%s2 + $0x144] sm:$0xf]
  %v673 = vld [vmem:[%s2 + $0x148] sm:$0xf]
  %v674 = vld [vmem:[%s2 + $0x14c] sm:$0xf]
  %v675 = vld [vmem:[%s2 + $0x150] sm:$0xf]
  %v676 = vld [vmem:[%s2 + $0x154] sm:$0xf]
  %v677 = vld [vmem:[%s2 + $0x158] sm:$0xf]
  %v678 = vld [vmem:[%s2 + $0x15c] sm:$0xf]
  %v679 = vld [vmem:[%s2 + $0x160] sm:$0xf]
  %v680 = vld [vmem:[%s2 + $0x164] sm:$0xf]
  %v681 = vld [vmem:[%s2 + $0x168] sm:$0xf]
  %v682 = vld [vmem:[%s2 + $0x16c] sm:$0xf]
  %v683 = vld [vmem:[%s2 + $0x170] sm:$0xf]
  %v684 = vld [vmem:[%s2 + $0x174] sm:$0xf]
  %v685 = vld [vmem:[%s2 + $0x178] sm:$0xf]
  %v686 = vld [vmem:[%s2 + $0x17c] sm:$0xf]
  %v687 = vld [vmem:[%s2 + $0x180] sm:$0xf]
  %v688 = vld [vmem:[%s2 + $0x184] sm:$0xf]
  %v689 = vld [vmem:[%s2 + $0x188] sm:$0xf]
  %v690 = vld [vmem:[%s2 + $0x18c] sm:$0xf]
  %v691 = vld [vmem:[%s2 + $0x190] sm:$0xf]
  %v692 = vld [vmem:[%s2 + $0x194] sm:$0xf]
  %v693 = vld [vmem:[%s2 + $0x198] sm:$0xf]
  %v694 = vld [vmem:[%s2 + $0x19c] sm:$0xf]
  %v695 = vld [vmem:[%s2 + $0x1a0] sm:$0xf]
  %v696 = vld [vmem:[%s2 + $0x1a4] sm:$0xf]
  %v697 = vld [vmem:[%s2 + $0x1a8] sm:$0xf]
  %v698 = vld [vmem:[%s2 + $0x1ac] sm:$0xf]
  %v699 = vld [vmem:[%s2 + $0x1b0] sm:$0xf]
  %v700 = vld [vmem:[%s2 + $0x1b4] sm:$0xf]
  %v701 = vld [vmem:[%s2 + $0x1b8] sm:$0xf]
  %v702 = vld [vmem:[%s2 + $0x1bc] sm:$0xf]
  %v703 = vld [vmem:[%s2 + $0x1c0] sm:$0xf]
  %v704 = vld [vmem:[%s2 + $0x1c4] sm:$0xf]
  %v705 = vld [vmem:[%s2 + $0x1c8] sm:$0xf]
  %v706 = vld [vmem:[%s2 + $0x1cc] sm:$0xf]
  %v707 = vld [vmem:[%s2 + $0x1d0] sm:$0xf]
  %v708 = vld [vmem:[%s2 + $0x1d4] sm:$0xf]
  %v709 = vld [vmem:[%s2 + $0x1d8] sm:$0xf]
  %v710 = vld [vmem:[%s2 + $0x1dc] sm:$0xf]
  %v711 = vld [vmem:[%s2 + $0x1e0] sm:$0xf]
  %v712 = vld [vmem:[%s2 + $0x1e4] sm:$0xf]
  %v713 = vld [vmem:[%s2 + $0x1e8] sm:$0xf]
  %v714 = vld [vmem:[%s2 + $0x1ec] sm:$0xf]
  %v715 = vld [vmem:[%s2 + $0x1f0] sm:$0xf]
  %v716 = vld [vmem:[%s2 + $0x1f4] sm:$0xf]
  %v717 = vld [vmem:[%s2 + $0x1f8] sm:$0xf]
  %v718 = vld [vmem:[%s2 + $0x1fc] sm:$0xf]
  %v847 = vunpack.c.l.b16 %v591
  %v848 = vunpack.c.l.b16 %v592
  %v849 = vunpack.c.l.b16 %v593
  %v850 = vunpack.c.l.b16 %v594
  %v851 = vunpack.c.l.b16 %v595
  %v852 = vunpack.c.l.b16 %v596
  %v853 = vunpack.c.l.b16 %v597
  %v854 = vunpack.c.l.b16 %v598
  %v855 = vunpack.c.l.b16 %v599
  %v856 = vunpack.c.l.b16 %v600
  %v857 = vunpack.c.l.b16 %v601
  %v858 = vunpack.c.l.b16 %v602
  %v859 = vunpack.c.l.b16 %v603
  %v860 = vunpack.c.l.b16 %v604
  %v861 = vunpack.c.l.b16 %v605
  %v862 = vunpack.c.l.b16 %v606
  %v863 = vunpack.c.l.b16 %v607
  %v864 = vunpack.c.l.b16 %v608
  %v865 = vunpack.c.l.b16 %v609
  %v866 = vunpack.c.l.b16 %v610
  %v867 = vunpack.c.l.b16 %v611
  %v868 = vunpack.c.l.b16 %v612
  %v869 = vunpack.c.l.b16 %v613
  %v870 = vunpack.c.l.b16 %v614
  %v871 = vunpack.c.l.b16 %v615
  %v872 = vunpack.c.l.b16 %v616
  %v873 = vunpack.c.l.b16 %v617
  %v874 = vunpack.c.l.b16 %v618
  %v875 = vunpack.c.l.b16 %v619
  %v876 = vunpack.c.l.b16 %v620
  %v877 = vunpack.c.l.b16 %v621
  %v878 = vunpack.c.l.b16 %v622
  %v879 = vunpack.c.l.b16 %v623
  %v880 = vunpack.c.l.b16 %v624
  %v881 = vunpack.c.l.b16 %v625
  %v882 = vunpack.c.l.b16 %v626
  %v883 = vunpack.c.l.b16 %v627
  %v884 = vunpack.c.l.b16 %v628
  %v885 = vunpack.c.l.b16 %v629
  %v886 = vunpack.c.l.b16 %v630
  %v887 = vunpack.c.l.b16 %v631
  %v888 = vunpack.c.l.b16 %v632
  %v889 = vunpack.c.l.b16 %v633
  %v890 = vunpack.c.l.b16 %v634
  %v891 = vunpack.c.l.b16 %v635
  %v892 = vunpack.c.l.b16 %v636
  %v893 = vunpack.c.l.b16 %v637
  %v894 = vunpack.c.l.b16 %v638
  %v895 = vunpack.c.l.b16 %v639
  %v896 = vunpack.c.l.b16 %v640
  %v897 = vunpack.c.l.b16 %v641
  %v898 = vunpack.c.l.b16 %v642
  %v899 = vunpack.c.l.b16 %v643
  %v900 = vunpack.c.l.b16 %v644
  %v901 = vunpack.c.l.b16 %v645
  %v902 = vunpack.c.l.b16 %v646
  %v903 = vunpack.c.l.b16 %v647
  %v904 = vunpack.c.l.b16 %v648
  %v905 = vunpack.c.l.b16 %v649
  %v906 = vunpack.c.l.b16 %v650
  %v907 = vunpack.c.l.b16 %v651
  %v908 = vunpack.c.l.b16 %v652
  %v909 = vunpack.c.l.b16 %v653
  %v910 = vunpack.c.l.b16 %v654
  %v911 = vunpack.c.l.b16 %v655
  %v912 = vunpack.c.l.b16 %v656
  %v913 = vunpack.c.l.b16 %v657
  %v914 = vunpack.c.l.b16 %v658
  %v915 = vunpack.c.l.b16 %v659
  %v916 = vunpack.c.l.b16 %v660
  %v917 = vunpack.c.l.b16 %v661
  %v918 = vunpack.c.l.b16 %v662
  %v919 = vunpack.c.l.b16 %v663
  %v920 = vunpack.c.l.b16 %v664
  %v921 = vunpack.c.l.b16 %v665
  %v922 = vunpack.c.l.b16 %v666
  %v923 = vunpack.c.l.b16 %v667
  %v924 = vunpack.c.l.b16 %v668
  %v925 = vunpack.c.l.b16 %v669
  %v926 = vunpack.c.l.b16 %v670
  %v927 = vunpack.c.l.b16 %v671
  %v928 = vunpack.c.l.b16 %v672
  %v929 = vunpack.c.l.b16 %v673
  %v930 = vunpack.c.l.b16 %v674
  %v931 = vunpack.c.l.b16 %v675
  %v932 = vunpack.c.l.b16 %v676
  %v933 = vunpack.c.l.b16 %v677
  %v934 = vunpack.c.l.b16 %v678
  %v935 = vunpack.c.l.b16 %v679
  %v936 = vunpack.c.l.b16 %v680
  %v937 = vunpack.c.l.b16 %v681
  %v938 = vunpack.c.l.b16 %v682
  %v939 = vunpack.c.l.b16 %v683
  %v940 = vunpack.c.l.b16 %v684
  %v941 = vunpack.c.l.b16 %v685
  %v942 = vunpack.c.l.b16 %v686
  %v943 = vunpack.c.l.b16 %v687
  %v944 = vunpack.c.l.b16 %v688
  %v945 = vunpack.c.l.b16 %v689
  %v946 = vunpack.c.l.b16 %v690
  %v947 = vunpack.c.l.b16 %v691
  %v948 = vunpack.c.l.b16 %v692
  %v949 = vunpack.c.l.b16 %v693
  %v950 = vunpack.c.l.b16 %v694
  %v951 = vunpack.c.l.b16 %v695
  %v952 = vunpack.c.l.b16 %v696
  %v953 = vunpack.c.l.b16 %v697
  %v954 = vunpack.c.l.b16 %v698
  %v955 = vunpack.c.l.b16 %v699
  %v956 = vunpack.c.l.b16 %v700
  %v957 = vunpack.c.l.b16 %v701
  %v958 = vunpack.c.l.b16 %v702
  %v959 = vunpack.c.l.b16 %v703
  %v960 = vunpack.c.l.b16 %v704
  %v961 = vunpack.c.l.b16 %v705
  %v962 = vunpack.c.l.b16 %v706
  %v963 = vunpack.c.l.b16 %v707
  %v964 = vunpack.c.l.b16 %v708
  %v965 = vunpack.c.l.b16 %v709
  %v966 = vunpack.c.l.b16 %v710
  %v967 = vunpack.c.l.b16 %v711
  %v968 = vunpack.c.l.b16 %v712
  %v969 = vunpack.c.l.b16 %v713
  %v970 = vunpack.c.l.b16 %v714
  %v971 = vunpack.c.l.b16 %v715
  %v972 = vunpack.c.l.b16 %v716
  %v973 = vunpack.c.l.b16 %v717
  %v974 = vunpack.c.l.b16 %v718
  %v975 = vpack.c.b16 %v848, %v847
  %v976 = vpack.c.b16 %v850, %v849
  %v977 = vpack.c.b16 %v852, %v851
  %v978 = vpack.c.b16 %v854, %v853
  %v979 = vpack.c.b16 %v856, %v855
  %v980 = vpack.c.b16 %v858, %v857
  %v981 = vpack.c.b16 %v860, %v859
  %v982 = vpack.c.b16 %v862, %v861
  %v983 = vpack.c.b16 %v864, %v863
  %v984 = vpack.c.b16 %v866, %v865
  %v985 = vpack.c.b16 %v868, %v867
  %v986 = vpack.c.b16 %v870, %v869
  %v987 = vpack.c.b16 %v872, %v871
  %v988 = vpack.c.b16 %v874, %v873
  %v989 = vpack.c.b16 %v876, %v875
  %v990 = vpack.c.b16 %v878, %v877
  %v991 = vpack.c.b16 %v880, %v879
  %v992 = vpack.c.b16 %v882, %v881
  %v993 = vpack.c.b16 %v884, %v883
  %v994 = vpack.c.b16 %v886, %v885
  %v995 = vpack.c.b16 %v888, %v887
  %v996 = vpack.c.b16 %v890, %v889
  %v997 = vpack.c.b16 %v892, %v891
  %v998 = vpack.c.b16 %v894, %v893
  %v999 = vpack.c.b16 %v896, %v895
  %v1000 = vpack.c.b16 %v898, %v897
  %v1001 = vpack.c.b16 %v900, %v899
  %v1002 = vpack.c.b16 %v902, %v901
  %v1003 = vpack.c.b16 %v904, %v903
  %v1004 = vpack.c.b16 %v906, %v905
  %v1005 = vpack.c.b16 %v908, %v907
  %v1006 = vpack.c.b16 %v910, %v909
  %v1007 = vpack.c.b16 %v912, %v911
  %v1008 = vpack.c.b16 %v914, %v913
  %v1009 = vpack.c.b16 %v916, %v915
  %v1010 = vpack.c.b16 %v918, %v917
  %v1011 = vpack.c.b16 %v920, %v919
  %v1012 = vpack.c.b16 %v922, %v921
  %v1013 = vpack.c.b16 %v924, %v923
  %v1014 = vpack.c.b16 %v926, %v925
  %v1015 = vpack.c.b16 %v928, %v927
  %v1016 = vpack.c.b16 %v930, %v929
  %v1017 = vpack.c.b16 %v932, %v931
  %v1018 = vpack.c.b16 %v934, %v933
  %v1019 = vpack.c.b16 %v936, %v935
  %v1020 = vpack.c.b16 %v938, %v937
  %v1021 = vpack.c.b16 %v940, %v939
  %v1022 = vpack.c.b16 %v942, %v941
  %v1023 = vpack.c.b16 %v944, %v943
  %v1024 = vpack.c.b16 %v946, %v945
  %v1025 = vpack.c.b16 %v948, %v947
  %v1026 = vpack.c.b16 %v950, %v949
  %v1027 = vpack.c.b16 %v952, %v951
  %v1028 = vpack.c.b16 %v954, %v953
  %v1029 = vpack.c.b16 %v956, %v955
  %v1030 = vpack.c.b16 %v958, %v957
  %v1031 = vpack.c.b16 %v960, %v959
  %v1032 = vpack.c.b16 %v962, %v961
  %v1033 = vpack.c.b16 %v964, %v963
  %v1034 = vpack.c.b16 %v966, %v965
  %v1035 = vpack.c.b16 %v968, %v967
  %v1036 = vpack.c.b16 %v970, %v969
  %v1037 = vpack.c.b16 %v972, %v971
  %v1038 = vpack.c.b16 %v974, %v973
  %1103 = vmatprep.subr.bf16.mxu0 0
  %1104 = vmatpush1.bf16.msra.mxu0 %v975
  %1105 = vmatprep.subr.bf16.mxu0 0
  %1106 = vmatpush1.bf16.msra.mxu0 %v976
  %1107 = vmatprep.subr.bf16.mxu0 0
  %1108 = vmatpush1.bf16.msra.mxu0 %v977
  %1109 = vmatprep.subr.bf16.mxu0 0
  %1110 = vmatpush1.bf16.msra.mxu0 %v978
  %1111 = vmatprep.subr.bf16.mxu0 0
  %1112 = vmatpush1.bf16.msra.mxu0 %v979
  %1113 = vmatprep.subr.bf16.mxu0 0
  %1114 = vmatpush1.bf16.msra.mxu0 %v980
  %1115 = vmatprep.subr.bf16.mxu0 0
  %1116 = vmatpush1.bf16.msra.mxu0 %v981
  %1117 = vmatprep.subr.bf16.mxu0 0
  %1118 = vmatpush1.bf16.msra.mxu0 %v982
  %1119 = vmatprep.subr.bf16.mxu0 0
  %1120 = vmatpush1.bf16.msra.mxu0 %v983
  %1121 = vmatprep.subr.bf16.mxu0 0
  %1122 = vmatpush1.bf16.msra.mxu0 %v984
  %1123 = vmatprep.subr.bf16.mxu0 0
  %1124 = vmatpush1.bf16.msra.mxu0 %v985
  %1125 = vmatprep.subr.bf16.mxu0 0
  %1126 = vmatpush1.bf16.msra.mxu0 %v986
  %1127 = vmatprep.subr.bf16.mxu0 0
  %1128 = vmatpush1.bf16.msra.mxu0 %v987
  %1129 = vmatprep.subr.bf16.mxu0 0
  %1130 = vmatpush1.bf16.msra.mxu0 %v988
  %1131 = vmatprep.subr.bf16.mxu0 0
  %1132 = vmatpush1.bf16.msra.mxu0 %v989
  %1133 = vmatprep.subr.bf16.mxu0 0
  %1134 = vmatpush1.bf16.msra.mxu0 %v990
  %1135 = vmatprep.mubr.bf16.mxu0 %v528
  %1136 = vmatmul.mubr.bf16.gmra.mrb[0].mxu0 %v527
  %v1137 = vpop.f32.mrb[0].mxu0
  %v1138 = vadd.f32 0.0, %v1137
  %v1139 = vpop.f32.mrb[0].mxu0
  %v1140 = vpop.f32.mrb[0].mxu0
  %v1141 = vadd.f32 0.0, %v1140
  %v1142 = vpop.f32.mrb[0].mxu0
  %1143 = vmatprep.mubr.bf16.mxu0 %v536
  %1144 = vmatmul.mubr.bf16.gmra.mrb[0].mxu0 %v535
  %v1145 = vpop.f32.mrb[0].mxu0
  %v1146 = vadd.f32 0.0, %v1145
  %v1147 = vpop.f32.mrb[0].mxu0
  %v1148 = vpop.f32.mrb[0].mxu0
  %v1149 = vadd.f32 0.0, %v1148
  %v1150 = vpop.f32.mrb[0].mxu0
  %1151 = vmatprep.mubr.bf16.mxu0 %v544
  %1152 = vmatmul.mubr.bf16.gmra.mrb[0].mxu0 %v543
  %v1153 = vpop.f32.mrb[0].mxu0
  %v1154 = vadd.f32 0.0, %v1153
  %v1155 = vpop.f32.mrb[0].mxu0
  %v1156 = vpop.f32.mrb[0].mxu0
  %v1157 = vadd.f32 0.0, %v1156
  %v1158 = vpop.f32.mrb[0].mxu0
  %1159 = vmatprep.mubr.bf16.mxu0 %v552
  %1160 = vmatmul.mubr.bf16.gmra.mrb[0].mxu0 %v551
  %v1161 = vpop.f32.mrb[0].mxu0
  %v1162 = vadd.f32 0.0, %v1161
  %v1163 = vpop.f32.mrb[0].mxu0
  %v1164 = vpop.f32.mrb[0].mxu0
  %v1165 = vadd.f32 0.0, %v1164
  %v1166 = vpop.f32.mrb[0].mxu0
  %1167 = vmatprep.mubr.bf16.mxu0 %v560
  %1168 = vmatmul.mubr.bf16.gmra.mrb[0].mxu0 %v559
  %v1169 = vpop.f32.mrb[0].mxu0
  %v1170 = vadd.f32 0.0, %v1169
  %v1171 = vpop.f32.mrb[0].mxu0
  %v1172 = vpop.f32.mrb[0].mxu0
  %v1173 = vadd.f32 0.0, %v1172
  %v1174 = vpop.f32.mrb[0].mxu0
  %1175 = vmatprep.mubr.bf16.mxu0 %v568
  %1176 = vmatmul.mubr.bf16.gmra.mrb[0].mxu0 %v567
  %v1177 = vpop.f32.mrb[0].mxu0
  %v1178 = vadd.f32 0.0, %v1177
  %v1179 = vpop.f32.mrb[0].mxu0
  %v1180 = vpop.f32.mrb[0].mxu0
  %v1181 = vadd.f32 0.0, %v1180
  %v1182 = vpop.f32.mrb[0].mxu0
  %1183 = vmatprep.mubr.bf16.mxu0 %v576
  %1184 = vmatmul.mubr.bf16.gmra.mrb[0].mxu0 %v575
  %v1185 = vpop.f32.mrb[0].mxu0
  %v1186 = vadd.f32 0.0, %v1185
  %v1187 = vpop.f32.mrb[0].mxu0
  %v1188 = vpop.f32.mrb[0].mxu0
  %v1189 = vadd.f32 0.0, %v1188
  %v1190 = vpop.f32.mrb[0].mxu0
  %1191 = vmatprep.mubr.bf16.mxu0 %v584
  %1192 = vmatmul.mubr.bf16.gmra.mrb[0].mxu0 %v583
  %v1193 = vpop.f32.mrb[0].mxu0
  %v1194 = vadd.f32 0.0, %v1193
  %v1195 = vpop.f32.mrb[0].mxu0
  %v1196 = vpop.f32.mrb[0].mxu0
  %v1197 = vadd.f32 0.0, %v1196
  %v1198 = vpop.f32.mrb[0].mxu0
  %1199 = vdwg.mxu0
  %1200 = vmatprep.subr.bf16.mxu0 0
  %1201 = vmatpush1.bf16.msra.mxu0 %v991
  %1202 = vmatprep.subr.bf16.mxu0 0
  %1203 = vmatpush1.bf16.msra.mxu0 %v992
  %1204 = vmatprep.subr.bf16.mxu0 0
  %1205 = vmatpush1.bf16.msra.mxu0 %v993
  %1206 = vmatprep.subr.bf16.mxu0 0
  %1207 = vmatpush1.bf16.msra.mxu0 %v994
  %1208 = vmatprep.subr.bf16.mxu0 0
  %1209 = vmatpush1.bf16.msra.mxu0 %v995
  %1210 = vmatprep.subr.bf16.mxu0 0
  %1211 = vmatpush1.bf16.msra.mxu0 %v996
  %1212 = vmatprep.subr.bf16.mxu0 0
  %1213 = vmatpush1.bf16.msra.mxu0 %v997
  %1214 = vmatprep.subr.bf16.mxu0 0
  %1215 = vmatpush1.bf16.msra.mxu0 %v998
  %1216 = vmatprep.subr.bf16.mxu0 0
  %1217 = vmatpush1.bf16.msra.mxu0 %v999
  %1218 = vmatprep.subr.bf16.mxu0 0
  %1219 = vmatpush1.bf16.msra.mxu0 %v1000
  %1220 = vmatprep.subr.bf16.mxu0 0
  %1221 = vmatpush1.bf16.msra.mxu0 %v1001
  %1222 = vmatprep.subr.bf16.mxu0 0
  %1223 = vmatpush1.bf16.msra.mxu0 %v1002
  %1224 = vmatprep.subr.bf16.mxu0 0
  %1225 = vmatpush1.bf16.msra.mxu0 %v1003
  %1226 = vmatprep.subr.bf16.mxu0 0
  %1227 = vmatpush1.bf16.msra.mxu0 %v1004
  %1228 = vmatprep.subr.bf16.mxu0 0
  %1229 = vmatpush1.bf16.msra.mxu0 %v1005
  %1230 = vmatprep.subr.bf16.mxu0 0
  %1231 = vmatpush1.bf16.msra.mxu0 %v1006
  %1232 = vmatprep.mubr.bf16.mxu0 %v530
  %1233 = vmatmul.mubr.bf16.gmra.mrb[0].mxu0 %v529
  %v1234 = vpop.f32.mrb[0].mxu0
  %v1235 = vadd.f32 %v1138, %v1234
  %v1236 = vpop.f32.mrb[0].mxu0
  %v1237 = vpop.f32.mrb[0].mxu0
  %v1238 = vadd.f32 %v1141, %v1237
  %v1239 = vpop.f32.mrb[0].mxu0
  %1240 = vmatprep.mubr.bf16.mxu0 %v538
  %1241 = vmatmul.mubr.bf16.gmra.mrb[0].mxu0 %v537
  %v1242 = vpop.f32.mrb[0].mxu0
  %v1243 = vadd.f32 %v1146, %v1242
  %v1244 = vpop.f32.mrb[0].mxu0
  %v1245 = vpop.f32.mrb[0].mxu0
  %v1246 = vadd.f32 %v1149, %v1245
  %v1247 = vpop.f32.mrb[0].mxu0
  %1248 = vmatprep.mubr.bf16.mxu0 %v546
  %1249 = vmatmul.mubr.bf16.gmra.mrb[0].mxu0 %v545
  %v1250 = vpop.f32.mrb[0].mxu0
  %v1251 = vadd.f32 %v1154, %v1250
  %v1252 = vpop.f32.mrb[0].mxu0
  %v1253 = vpop.f32.mrb[0].mxu0
  %v1254 = vadd.f32 %v1157, %v1253
  %v1255 = vpop.f32.mrb[0].mxu0
  %1256 = vmatprep.mubr.bf16.mxu0 %v554
  %1257 = vmatmul.mubr.bf16.gmra.mrb[0].mxu0 %v553
  %v1258 = vpop.f32.mrb[0].mxu0
  %v1259 = vadd.f32 %v1162, %v1258
  %v1260 = vpop.f32.mrb[0].mxu0
  %v1261 = vpop.f32.mrb[0].mxu0
  %v1262 = vadd.f32 %v1165, %v1261
  %v1263 = vpop.f32.mrb[0].mxu0
  %1264 = vmatprep.mubr.bf16.mxu0 %v562
  %1265 = vmatmul.mubr.bf16.gmra.mrb[0].mxu0 %v561
  %v1266 = vpop.f32.mrb[0].mxu0
  %v1267 = vadd.f32 %v1170, %v1266
  %v1268 = vpop.f32.mrb[0].mxu0
  %v1269 = vpop.f32.mrb[0].mxu0
  %v1270 = vadd.f32 %v1173, %v1269
  %v1271 = vpop.f32.mrb[0].mxu0
  %1272 = vmatprep.mubr.bf16.mxu0 %v570
  %1273 = vmatmul.mubr.bf16.gmra.mrb[0].mxu0 %v569
  %v1274 = vpop.f32.mrb[0].mxu0
  %v1275 = vadd.f32 %v1178, %v1274
  %v1276 = vpop.f32.mrb[0].mxu0
  %v1277 = vpop.f32.mrb[0].mxu0
  %v1278 = vadd.f32 %v1181, %v1277
  %v1279 = vpop.f32.mrb[0].mxu0
  %1280 = vmatprep.mubr.bf16.mxu0 %v578
  %1281 = vmatmul.mubr.bf16.gmra.mrb[0].mxu0 %v577
  %v1282 = vpop.f32.mrb[0].mxu0
  %v1283 = vadd.f32 %v1186, %v1282
  %v1284 = vpop.f32.mrb[0].mxu0
  %v1285 = vpop.f32.mrb[0].mxu0
  %v1286 = vadd.f32 %v1189, %v1285
  %v1287 = vpop.f32.mrb[0].mxu0
  %1288 = vmatprep.mubr.bf16.mxu0 %v586
  %1289 = vmatmul.mubr.bf16.gmra.mrb[0].mxu0 %v585
  %v1290 = vpop.f32.mrb[0].mxu0
  %v1291 = vadd.f32 %v1194, %v1290
  %v1292 = vpop.f32.mrb[0].mxu0
  %v1293 = vpop.f32.mrb[0].mxu0
  %v1294 = vadd.f32 %v1197, %v1293
  %v1295 = vpop.f32.mrb[0].mxu0
  %1296 = vdwg.mxu0
  %1297 = vmatprep.subr.bf16.mxu0 0
  %1298 = vmatpush1.bf16.msra.mxu0 %v1007
  %1299 = vmatprep.subr.bf16.mxu0 0
  %1300 = vmatpush1.bf16.msra.mxu0 %v1008
  %1301 = vmatprep.subr.bf16.mxu0 0
  %1302 = vmatpush1.bf16.msra.mxu0 %v1009
  %1303 = vmatprep.subr.bf16.mxu0 0
  %1304 = vmatpush1.bf16.msra.mxu0 %v1010
  %1305 = vmatprep.subr.bf16.mxu0 0
  %1306 = vmatpush1.bf16.msra.mxu0 %v1011
  %1307 = vmatprep.subr.bf16.mxu0 0
  %1308 = vmatpush1.bf16.msra.mxu0 %v1012
  %1309 = vmatprep.subr.bf16.mxu0 0
  %1310 = vmatpush1.bf16.msra.mxu0 %v1013
  %1311 = vmatprep.subr.bf16.mxu0 0
  %1312 = vmatpush1.bf16.msra.mxu0 %v1014
  %1313 = vmatprep.subr.bf16.mxu0 0
  %1314 = vmatpush1.bf16.msra.mxu0 %v1015
  %1315 = vmatprep.subr.bf16.mxu0 0
  %1316 = vmatpush1.bf16.msra.mxu0 %v1016
  %1317 = vmatprep.subr.bf16.mxu0 0
  %1318 = vmatpush1.bf16.msra.mxu0 %v1017
  %1319 = vmatprep.subr.bf16.mxu0 0
  %1320 = vmatpush1.bf16.msra.mxu0 %v1018
  %1321 = vmatprep.subr.bf16.mxu0 0
  %1322 = vmatpush1.bf16.msra.mxu0 %v1019
  %1323 = vmatprep.subr.bf16.mxu0 0
  %1324 = vmatpush1.bf16.msra.mxu0 %v1020
  %1325 = vmatprep.subr.bf16.mxu0 0
  %1326 = vmatpush1.bf16.msra.mxu0 %v1021
  %1327 = vmatprep.subr.bf16.mxu0 0
  %1328 = vmatpush1.bf16.msra.mxu0 %v1022
  %1329 = vmatprep.mubr.bf16.mxu0 %v532
  %1330 = vmatmul.mubr.bf16.gmra.mrb[0].mxu0 %v531
  %v1331 = vpop.f32.mrb[0].mxu0
  %v1332 = vadd.f32 %v1235, %v1331
  %v1333 = vpop.f32.mrb[0].mxu0
  %v1334 = vpop.f32.mrb[0].mxu0
  %v1335 = vadd.f32 %v1238, %v1334
  %v1336 = vpop.f32.mrb[0].mxu0
  %1337 = vmatprep.mubr.bf16.mxu0 %v540
  %1338 = vmatmul.mubr.bf16.gmra.mrb[0].mxu0 %v539
  %v1339 = vpop.f32.mrb[0].mxu0
  %v1340 = vadd.f32 %v1243, %v1339
  %v1341 = vpop.f32.mrb[0].mxu0
  %v1342 = vpop.f32.mrb[0].mxu0
  %v1343 = vadd.f32 %v1246, %v1342
  %v1344 = vpop.f32.mrb[0].mxu0
  %1345 = vmatprep.mubr.bf16.mxu0 %v548
  %1346 = vmatmul.mubr.bf16.gmra.mrb[0].mxu0 %v547
  %v1347 = vpop.f32.mrb[0].mxu0
  %v1348 = vadd.f32 %v1251, %v1347
  %v1349 = vpop.f32.mrb[0].mxu0
  %v1350 = vpop.f32.mrb[0].mxu0
  %v1351 = vadd.f32 %v1254, %v1350
  %v1352 = vpop.f32.mrb[0].mxu0
  %1353 = vmatprep.mubr.bf16.mxu0 %v556
  %1354 = vmatmul.mubr.bf16.gmra.mrb[0].mxu0 %v555
  %v1355 = vpop.f32.mrb[0].mxu0
  %v1356 = vadd.f32 %v1259, %v1355
  %v1357 = vpop.f32.mrb[0].mxu0
  %v1358 = vpop.f32.mrb[0].mxu0
  %v1359 = vadd.f32 %v1262, %v1358
  %v1360 = vpop.f32.mrb[0].mxu0
  %1361 = vmatprep.mubr.bf16.mxu0 %v564
  %1362 = vmatmul.mubr.bf16.gmra.mrb[0].mxu0 %v563
  %v1363 = vpop.f32.mrb[0].mxu0
  %v1364 = vadd.f32 %v1267, %v1363
  %v1365 = vpop.f32.mrb[0].mxu0
  %v1366 = vpop.f32.mrb[0].mxu0
  %v1367 = vadd.f32 %v1270, %v1366
  %v1368 = vpop.f32.mrb[0].mxu0
  %1369 = vmatprep.mubr.bf16.mxu0 %v572
  %1370 = vmatmul.mubr.bf16.gmra.mrb[0].mxu0 %v571
  %v1371 = vpop.f32.mrb[0].mxu0
  %v1372 = vadd.f32 %v1275, %v1371
  %v1373 = vpop.f32.mrb[0].mxu0
  %v1374 = vpop.f32.mrb[0].mxu0
  %v1375 = vadd.f32 %v1278, %v1374
  %v1376 = vpop.f32.mrb[0].mxu0
  %1377 = vmatprep.mubr.bf16.mxu0 %v580
  %1378 = vmatmul.mubr.bf16.gmra.mrb[0].mxu0 %v579
  %v1379 = vpop.f32.mrb[0].mxu0
  %v1380 = vadd.f32 %v1283, %v1379
  %v1381 = vpop.f32.mrb[0].mxu0
  %v1382 = vpop.f32.mrb[0].mxu0
  %v1383 = vadd.f32 %v1286, %v1382
  %v1384 = vpop.f32.mrb[0].mxu0
  %1385 = vmatprep.mubr.bf16.mxu0 %v588
  %1386 = vmatmul.mubr.bf16.gmra.mrb[0].mxu0 %v587
  %v1387 = vpop.f32.mrb[0].mxu0
  %v1388 = vadd.f32 %v1291, %v1387
  %v1389 = vpop.f32.mrb[0].mxu0
  %v1390 = vpop.f32.mrb[0].mxu0
  %v1391 = vadd.f32 %v1294, %v1390
  %v1392 = vpop.f32.mrb[0].mxu0
  %1393 = vdwg.mxu0
  %1394 = vmatprep.subr.bf16.mxu0 0
  %1395 = vmatpush1.bf16.msra.mxu0 %v1023
  %1396 = vmatprep.subr.bf16.mxu0 0
  %1397 = vmatpush1.bf16.msra.mxu0 %v1024
  %1398 = vmatprep.subr.bf16.mxu0 0
  %1399 = vmatpush1.bf16.msra.mxu0 %v1025
  %1400 = vmatprep.subr.bf16.mxu0 0
  %1401 = vmatpush1.bf16.msra.mxu0 %v1026
  %1402 = vmatprep.subr.bf16.mxu0 0
  %1403 = vmatpush1.bf16.msra.mxu0 %v1027
  %1404 = vmatprep.subr.bf16.mxu0 0
  %1405 = vmatpush1.bf16.msra.mxu0 %v1028
  %1406 = vmatprep.subr.bf16.mxu0 0
  %1407 = vmatpush1.bf16.msra.mxu0 %v1029
  %1408 = vmatprep.subr.bf16.mxu0 0
  %1409 = vmatpush1.bf16.msra.mxu0 %v1030
  %1410 = vmatprep.subr.bf16.mxu0 0
  %1411 = vmatpush1.bf16.msra.mxu0 %v1031
  %1412 = vmatprep.subr.bf16.mxu0 0
  %1413 = vmatpush1.bf16.msra.mxu0 %v1032
  %1414 = vmatprep.subr.bf16.mxu0 0
  %1415 = vmatpush1.bf16.msra.mxu0 %v1033
  %1416 = vmatprep.subr.bf16.mxu0 0
  %1417 = vmatpush1.bf16.msra.mxu0 %v1034
  %1418 = vmatprep.subr.bf16.mxu0 0
  %1419 = vmatpush1.bf16.msra.mxu0 %v1035
  %1420 = vmatprep.subr.bf16.mxu0 0
  %1421 = vmatpush1.bf16.msra.mxu0 %v1036
  %1422 = vmatprep.subr.bf16.mxu0 0
  %1423 = vmatpush1.bf16.msra.mxu0 %v1037
  %1424 = vmatprep.subr.bf16.mxu0 0
  %1425 = vmatpush1.bf16.msra.mxu0 %v1038
  %1426 = vmatprep.mubr.bf16.mxu0 %v534
  %1427 = vmatmul.mubr.bf16.gmra.mrb[0].mxu0 %v533
  %v1428 = vpop.f32.mrb[0].mxu0
  %v1429 = vadd.f32 %v1332, %v1428
  %v1430 = vpop.f32.mrb[0].mxu0
  %v1431 = vpop.f32.mrb[0].mxu0
  %v1432 = vadd.f32 %v1335, %v1431
  %v1433 = vpop.f32.mrb[0].mxu0
  %1434 = vmatprep.mubr.bf16.mxu0 %v542
  %1435 = vmatmul.mubr.bf16.gmra.mrb[0].mxu0 %v541
  %v1436 = vpop.f32.mrb[0].mxu0
  %v1437 = vadd.f32 %v1340, %v1436
  %v1438 = vpop.f32.mrb[0].mxu0
  %v1439 = vpop.f32.mrb[0].mxu0
  %v1440 = vadd.f32 %v1343, %v1439
  %v1441 = vpop.f32.mrb[0].mxu0
  %1442 = vmatprep.mubr.bf16.mxu0 %v550
  %1443 = vmatmul.mubr.bf16.gmra.mrb[0].mxu0 %v549
  %v1444 = vpop.f32.mrb[0].mxu0
  %v1445 = vadd.f32 %v1348, %v1444
  %v1446 = vpop.f32.mrb[0].mxu0
  %v1447 = vpop.f32.mrb[0].mxu0
  %v1448 = vadd.f32 %v1351, %v1447
  %v1449 = vpop.f32.mrb[0].mxu0
  %1450 = vmatprep.mubr.bf16.mxu0 %v558
  %1451 = vmatmul.mubr.bf16.gmra.mrb[0].mxu0 %v557
  %v1452 = vpop.f32.mrb[0].mxu0
  %v1453 = vadd.f32 %v1356, %v1452
  %v1454 = vpop.f32.mrb[0].mxu0
  %v1455 = vpop.f32.mrb[0].mxu0
  %v1456 = vadd.f32 %v1359, %v1455
  %v1457 = vpop.f32.mrb[0].mxu0
  %1458 = vmatprep.mubr.bf16.mxu0 %v566
  %1459 = vmatmul.mubr.bf16.gmra.mrb[0].mxu0 %v565
  %v1460 = vpop.f32.mrb[0].mxu0
  %v1461 = vadd.f32 %v1364, %v1460
  %v1462 = vpop.f32.mrb[0].mxu0
  %v1463 = vpop.f32.mrb[0].mxu0
  %v1464 = vadd.f32 %v1367, %v1463
  %v1465 = vpop.f32.mrb[0].mxu0
  %1466 = vmatprep.mubr.bf16.mxu0 %v574
  %1467 = vmatmul.mubr.bf16.gmra.mrb[0].mxu0 %v573
  %v1468 = vpop.f32.mrb[0].mxu0
  %v1469 = vadd.f32 %v1372, %v1468
  %v1470 = vpop.f32.mrb[0].mxu0
  %v1471 = vpop.f32.mrb[0].mxu0
  %v1472 = vadd.f32 %v1375, %v1471
  %v1473 = vpop.f32.mrb[0].mxu0
  %1474 = vmatprep.mubr.bf16.mxu0 %v582
  %1475 = vmatmul.mubr.bf16.gmra.mrb[0].mxu0 %v581
  %v1476 = vpop.f32.mrb[0].mxu0
  %v1477 = vadd.f32 %v1380, %v1476
  %v1478 = vpop.f32.mrb[0].mxu0
  %v1479 = vpop.f32.mrb[0].mxu0
  %v1480 = vadd.f32 %v1383, %v1479
  %v1481 = vpop.f32.mrb[0].mxu0
  %1482 = vmatprep.mubr.bf16.mxu0 %v590
  %1483 = vmatmul.mubr.bf16.gmra.mrb[0].mxu0 %v589
  %v1484 = vpop.f32.mrb[0].mxu0
  %v1485 = vadd.f32 %v1388, %v1484
  %v1486 = vpop.f32.mrb[0].mxu0
  %v1487 = vpop.f32.mrb[0].mxu0
  %v1488 = vadd.f32 %v1391, %v1487
  %v1489 = vpop.f32.mrb[0].mxu0
  %1490 = vdwg.mxu0
  %v1491 = vmul.f32 %v1429, %v1429
  %v1492 = vmul.f32 %v1432, %v1432
  %v1493 = vmul.f32 %v1437, %v1437
  %v1494 = vmul.f32 %v1440, %v1440
  %v1495 = vmul.f32 %v1445, %v1445
  %v1496 = vmul.f32 %v1448, %v1448
  %v1497 = vmul.f32 %v1453, %v1453
  %v1498 = vmul.f32 %v1456, %v1456
  %v1499 = vmul.f32 %v1461, %v1461
  %v1500 = vmul.f32 %v1464, %v1464
  %v1501 = vmul.f32 %v1469, %v1469
  %v1502 = vmul.f32 %v1472, %v1472
  %v1503 = vmul.f32 %v1477, %v1477
  %v1504 = vmul.f32 %v1480, %v1480
  %v1505 = vmul.f32 %v1485, %v1485
  %v1506 = vmul.f32 %v1488, %v1488
  %vm1507 = vcmask 261120
  %v1508 = vsel %vm1507, %v1491, 0.0
  %1509 = vadd.xlane.f32.xlu0 %v1508
  %v1510 = vpop.xlane.xlu0 %1509
  %v1511 = vsel %vm1507, %v1492, 0.0
  %1512 = vadd.xlane.f32.xlu0 %v1511
  %v1513 = vpop.xlane.xlu0 %1512
  %v1514 = vsel %vm1507, %v1493, 0.0
  %1515 = vadd.xlane.f32.xlu0 %v1514
  %v1516 = vpop.xlane.xlu0 %1515
  %v1517 = vsel %vm1507, %v1494, 0.0
  %1518 = vadd.xlane.f32.xlu0 %v1517
  %v1519 = vpop.xlane.xlu0 %1518
  %v1520 = vsel %vm1507, %v1495, 0.0
  %1521 = vadd.xlane.f32.xlu0 %v1520
  %v1522 = vpop.xlane.xlu0 %1521
  %v1523 = vsel %vm1507, %v1496, 0.0
  %1524 = vadd.xlane.f32.xlu0 %v1523
  %v1525 = vpop.xlane.xlu0 %1524
  %v1526 = vsel %vm1507, %v1497, 0.0
  %1527 = vadd.xlane.f32.xlu0 %v1526
  %v1528 = vpop.xlane.xlu0 %1527
  %v1529 = vsel %vm1507, %v1498, 0.0
  %1530 = vadd.xlane.f32.xlu0 %v1529
  %v1531 = vpop.xlane.xlu0 %1530
  %v1532 = vsel %vm1507, %v1499, 0.0
  %1533 = vadd.xlane.f32.xlu0 %v1532
  %v1534 = vpop.xlane.xlu0 %1533
  %v1535 = vsel %vm1507, %v1500, 0.0
  %1536 = vadd.xlane.f32.xlu0 %v1535
  %v1537 = vpop.xlane.xlu0 %1536
  %v1538 = vsel %vm1507, %v1501, 0.0
  %1539 = vadd.xlane.f32.xlu0 %v1538
  %v1540 = vpop.xlane.xlu0 %1539
  %v1541 = vsel %vm1507, %v1502, 0.0
  %1542 = vadd.xlane.f32.xlu0 %v1541
  %v1543 = vpop.xlane.xlu0 %1542
  %v1544 = vsel %vm1507, %v1503, 0.0
  %1545 = vadd.xlane.f32.xlu0 %v1544
  %v1546 = vpop.xlane.xlu0 %1545
  %v1547 = vsel %vm1507, %v1504, 0.0
  %1548 = vadd.xlane.f32.xlu0 %v1547
  %v1549 = vpop.xlane.xlu0 %1548
  %v1550 = vsel %vm1507, %v1505, 0.0
  %1551 = vadd.xlane.f32.xlu0 %v1550
  %v1552 = vpop.xlane.xlu0 %1551
  %v1553 = vsel %vm1507, %v1506, 0.0
  %1554 = vadd.xlane.f32.xlu0 %v1553
  %v1555 = vpop.xlane.xlu0 %1554
  %v1556 = vrsqrt.pop %v1510
  %v1557 = vmul.f32 %v1510, %v1556
  %vm1558 = vcmp.eq.f32.partialorder %v1510, inf
  %v1559 = vsel %vm1558, %v1510, %v1557
  %vm1560 = vcmp.eq.f32.partialorder %v1510, 0.0
  %v1561 = vand.u32 %v1510, 2147483648
  %v1562 = vsel %vm1560, %v1561, %v1559
  %v1563 = vrsqrt.pop %v1513
  %v1564 = vmul.f32 %v1513, %v1563
  %vm1565 = vcmp.eq.f32.partialorder %v1513, inf
  %v1566 = vsel %vm1565, %v1513, %v1564
  %vm1567 = vcmp.eq.f32.partialorder %v1513, 0.0
  %v1568 = vand.u32 %v1513, 2147483648
  %v1569 = vsel %vm1567, %v1568, %v1566
  %v1570 = vrsqrt.pop %v1516
  %v1571 = vmul.f32 %v1516, %v1570
  %vm1572 = vcmp.eq.f32.partialorder %v1516, inf
  %v1573 = vsel %vm1572, %v1516, %v1571
  %vm1574 = vcmp.eq.f32.partialorder %v1516, 0.0
  %v1575 = vand.u32 %v1516, 2147483648
  %v1576 = vsel %vm1574, %v1575, %v1573
  %v1577 = vrsqrt.pop %v1519
  %v1578 = vmul.f32 %v1519, %v1577
  %vm1579 = vcmp.eq.f32.partialorder %v1519, inf
  %v1580 = vsel %vm1579, %v1519, %v1578
  %vm1581 = vcmp.eq.f32.partialorder %v1519, 0.0
  %v1582 = vand.u32 %v1519, 2147483648
  %v1583 = vsel %vm1581, %v1582, %v1580
  %v1584 = vrsqrt.pop %v1522
  %v1585 = vmul.f32 %v1522, %v1584
  %vm1586 = vcmp.eq.f32.partialorder %v1522, inf
  %v1587 = vsel %vm1586, %v1522, %v1585
  %vm1588 = vcmp.eq.f32.partialorder %v1522, 0.0
  %v1589 = vand.u32 %v1522, 2147483648
  %v1590 = vsel %vm1588, %v1589, %v1587
  %v1591 = vrsqrt.pop %v1525
  %v1592 = vmul.f32 %v1525, %v1591
  %vm1593 = vcmp.eq.f32.partialorder %v1525, inf
  %v1594 = vsel %vm1593, %v1525, %v1592
  %vm1595 = vcmp.eq.f32.partialorder %v1525, 0.0
  %v1596 = vand.u32 %v1525, 2147483648
  %v1597 = vsel %vm1595, %v1596, %v1594
  %v1598 = vrsqrt.pop %v1528
  %v1599 = vmul.f32 %v1528, %v1598
  %vm1600 = vcmp.eq.f32.partialorder %v1528, inf
  %v1601 = vsel %vm1600, %v1528, %v1599
  %vm1602 = vcmp.eq.f32.partialorder %v1528, 0.0
  %v1603 = vand.u32 %v1528, 2147483648
  %v1604 = vsel %vm1602, %v1603, %v1601
  %v1605 = vrsqrt.pop %v1531
  %v1606 = vmul.f32 %v1531, %v1605
  %vm1607 = vcmp.eq.f32.partialorder %v1531, inf
  %v1608 = vsel %vm1607, %v1531, %v1606
  %vm1609 = vcmp.eq.f32.partialorder %v1531, 0.0
  %v1610 = vand.u32 %v1531, 2147483648
  %v1611 = vsel %vm1609, %v1610, %v1608
  %v1612 = vrsqrt.pop %v1534
  %v1613 = vmul.f32 %v1534, %v1612
  %vm1614 = vcmp.eq.f32.partialorder %v1534, inf
  %v1615 = vsel %vm1614, %v1534, %v1613
  %vm1616 = vcmp.eq.f32.partialorder %v1534, 0.0
  %v1617 = vand.u32 %v1534, 2147483648
  %v1618 = vsel %vm1616, %v1617, %v1615
  %v1619 = vrsqrt.pop %v1537
  %v1620 = vmul.f32 %v1537, %v1619
  %vm1621 = vcmp.eq.f32.partialorder %v1537, inf
  %v1622 = vsel %vm1621, %v1537, %v1620
  %vm1623 = vcmp.eq.f32.partialorder %v1537, 0.0
  %v1624 = vand.u32 %v1537, 2147483648
  %v1625 = vsel %vm1623, %v1624, %v1622
  %v1626 = vrsqrt.pop %v1540
  %v1627 = vmul.f32 %v1540, %v1626
  %vm1628 = vcmp.eq.f32.partialorder %v1540, inf
  %v1629 = vsel %vm1628, %v1540, %v1627
  %vm1630 = vcmp.eq.f32.partialorder %v1540, 0.0
  %v1631 = vand.u32 %v1540, 2147483648
  %v1632 = vsel %vm1630, %v1631, %v1629
  %v1633 = vrsqrt.pop %v1543
  %v1634 = vmul.f32 %v1543, %v1633
  %vm1635 = vcmp.eq.f32.partialorder %v1543, inf
  %v1636 = vsel %vm1635, %v1543, %v1634
  %vm1637 = vcmp.eq.f32.partialorder %v1543, 0.0
  %v1638 = vand.u32 %v1543, 2147483648
  %v1639 = vsel %vm1637, %v1638, %v1636
  %v1640 = vrsqrt.pop %v1546
  %v1641 = vmul.f32 %v1546, %v1640
  %vm1642 = vcmp.eq.f32.partialorder %v1546, inf
  %v1643 = vsel %vm1642, %v1546, %v1641
  %vm1644 = vcmp.eq.f32.partialorder %v1546, 0.0
  %v1645 = vand.u32 %v1546, 2147483648
  %v1646 = vsel %vm1644, %v1645, %v1643
  %v1647 = vrsqrt.pop %v1549
  %v1648 = vmul.f32 %v1549, %v1647
  %vm1649 = vcmp.eq.f32.partialorder %v1549, inf
  %v1650 = vsel %vm1649, %v1549, %v1648
  %vm1651 = vcmp.eq.f32.partialorder %v1549, 0.0
  %v1652 = vand.u32 %v1549, 2147483648
  %v1653 = vsel %vm1651, %v1652, %v1650
  %v1654 = vrsqrt.pop %v1552
  %v1655 = vmul.f32 %v1552, %v1654
  %vm1656 = vcmp.eq.f32.partialorder %v1552, inf
  %v1657 = vsel %vm1656, %v1552, %v1655
  %vm1658 = vcmp.eq.f32.partialorder %v1552, 0.0
  %v1659 = vand.u32 %v1552, 2147483648
  %v1660 = vsel %vm1658, %v1659, %v1657
  %v1661 = vrsqrt.pop %v1555
  %v1662 = vmul.f32 %v1555, %v1661
  %vm1663 = vcmp.eq.f32.partialorder %v1555, inf
  %v1664 = vsel %vm1663, %v1555, %v1662
  %vm1665 = vcmp.eq.f32.partialorder %v1555, 0.0
  %v1666 = vand.u32 %v1555, 2147483648
  %v1667 = vsel %vm1665, %v1666, %v1664
  %v1668 = vadd.f32 %v1562, 0.5
  %v1669 = vadd.f32 %v1569, 0.5
  %v1670 = vadd.f32 %v1576, 0.5
  %v1671 = vadd.f32 %v1583, 0.5
  %v1672 = vadd.f32 %v1590, 0.5
  %v1673 = vadd.f32 %v1597, 0.5
  %v1674 = vadd.f32 %v1604, 0.5
  %v1675 = vadd.f32 %v1611, 0.5
  %v1676 = vadd.f32 %v1618, 0.5
  %v1677 = vadd.f32 %v1625, 0.5
  %v1678 = vadd.f32 %v1632, 0.5
  %v1679 = vadd.f32 %v1639, 0.5
  %v1680 = vadd.f32 %v1646, 0.5
  %v1681 = vadd.f32 %v1653, 0.5
  %v1682 = vadd.f32 %v1660, 0.5
  %v1683 = vadd.f32 %v1667, 0.5
  %1684 = vxpose.xlu0.b32.start [1/16] %v1668, 128
  %1685 = vxpose.xlu0.b32.cont [2/16] %v1669, 128
  %1686 = vxpose.xlu0.b32.cont [3/16] %v1670, 128
  %1687 = vxpose.xlu0.b32.cont [4/16] %v1671, 128
  %1688 = vxpose.xlu0.b32.cont [5/16] %v1672, 128
  %1689 = vxpose.xlu0.b32.cont [6/16] %v1673, 128
  %1690 = vxpose.xlu0.b32.cont [7/16] %v1674, 128
  %1691 = vxpose.xlu0.b32.cont [8/16] %v1675, 128
  %1692 = vxpose.xlu0.b32.cont [9/16] %v1676, 128
  %1693 = vxpose.xlu0.b32.cont [10/16] %v1677, 128
  %1694 = vxpose.xlu0.b32.cont [11/16] %v1678, 128
  %1695 = vxpose.xlu0.b32.cont [12/16] %v1679, 128
  %1696 = vxpose.xlu0.b32.cont [13/16] %v1680, 128
  %1697 = vxpose.xlu0.b32.cont [14/16] %v1681, 128
  %1698 = vxpose.xlu0.b32.cont [15/16] %v1682, 128
  %1699 = vxpose.xlu0.b32.end [16/16] %v1683, 128
  %v1700 = vpop.trf.xlu0
  %v1701 = vpop.trf.xlu0
  %v1702 = vpop.trf.xlu0
  %v1703 = vpop.trf.xlu0
  %v1704 = vpop.trf.xlu0
  %v1705 = vpop.trf.xlu0
  %v1706 = vpop.trf.xlu0
  %v1707 = vpop.trf.xlu0
  %v1708 = vpop.trf.xlu0
  %v1709 = vpop.trf.xlu0
  %v1710 = vpop.trf.xlu0
  %v1711 = vpop.trf.xlu0
  %v1712 = vpop.trf.xlu0
  %v1713 = vpop.trf.xlu0
  %v1714 = vpop.trf.xlu0
  %v1715 = vpop.trf.xlu0
  %1716 = vst [vmem:[%s3] sm:$0x1] %v1700
  // Predicated region
  $region14: #{trivial_distance_siamese.1} parent=0 // pred_check
    _
  $region15: #{trivial_distance_siamese.1} parent=0 // pred_check_branch
    %1718 = sbr.rel (0) target = $region17
  $region16: #{trivial_distance_siamese.1} parent=0 // pred_region
    _
  $region17: #{trivial_distance_siamese.1} parent=0 // pred_fallthru
    _
  // Predicated region
  $region18: #{trivial_distance_siamese.1} parent=0 // pred_check
    _
  $region19: #{trivial_distance_siamese.1} parent=0 // pred_check_branch
    %1720 = sbr.rel (0) target = $region21
  $region20: #{trivial_distance_siamese.1} parent=0 // pred_region
    _
  $region21: #{trivial_distance_siamese.1} parent=0 // pred_fallthru
    _

</llo_original>
